<compile_context>
chip_gen: v6e
topology: v6e:2x2x1
jax: 0.10.0
libtpu: 0.0.40
codegen_flags: <defaults>
</compile_context>

<pallas_src>
import functools

import numpy as np
import jax
import jax.numpy as jnp
from jax.experimental import pallas as pl
from jax.experimental.pallas import tpu as pltpu

LANES = 128     # lane width used for FC class padding and per-image stride


# ----------------------------------------------------------------------------
# Fused whole-network kernel (one grid step == one batch chunk of B images)
# ----------------------------------------------------------------------------
def _resnet_cam_kernel(x_ref, w_ref, bias_ref, fcw_ref, fcb_ref, mask_ref,
                       out_ref, pad_ref, patch_ref, *, H, W, C, B, S):
    # x_ref:     (B, C, S)       lane-dense zero-padded images (padded spatial
    #                            flattened onto lanes; S = roundup((H+2)*(W+2),128))
    # w_ref:     (5, C, 9*C)     conv weights, im2col layout, BN scale folded in
    # bias_ref:  (5, C, 1)       folded-BN bias per layer
    # fcw_ref:   (C, 128)        FC weight * 1/(H*W), classes zero-padded to 128
    # fcb_ref:   (1, 128)        FC bias, classes zero-padded to 128
    # mask_ref:  (1, B*S)        1.0 on valid conv-output lanes, 0.0 on the
    #                            stride-(W+2) garbage columns / per-image tail
    # out_ref:   (B, 1, 128)     lane-dense logits
    # pad_ref:   VMEM (C, B*S+128)  padded activations (channels on sublanes)
    # patch_ref: VMEM (9*C, B*S)    im2col patch buffer, already in dot shape
    PW = W + 2
    HPW = H * PW                 # conv-output lanes per image (incl. garbage cols)
    L = B * S

    # Load the batch chunk: full-width, 128-aligned copies.  The zero spatial
    # halo arrives pre-baked from the wrapper; zero the small read-over tail.
    for b in range(B):
        pad_ref[:, b * S:(b + 1) * S] = x_ref[b]
    pad_ref[:, L:] = jnp.zeros((C, pad_ref.shape[1] - L), jnp.float32)

    valid = mask_ref[...] != 0.0            # (1, B*S) bool, broadcasts over C

    def conv_bn_relu(idx, residual=None, write_back=True):
        # im2col: 9 shifted taps; each is ONE full-width lane-shifted copy
        # covering the whole batch chunk, stored to sublane-aligned rows.
        for kh in range(3):
            for kw in range(3):
                k = kh * 3 + kw
                off = kh * PW + kw
                patch_ref[k * C:(k + 1) * C, :] = pad_ref[:, off:off + L]
        # One K = 9*C matmul per layer; bf16 operands, f32 accumulate.  Result
        # is lane-dense: (C, B*S) = channels on sublanes, spatial on lanes.
        y = jnp.dot(w_ref[idx].astype(jnp.bfloat16),
                    patch_ref[...].astype(jnp.bfloat16),
                    preferred_element_type=jnp.float32)
        y = y + bias_ref[idx]                        # folded-BatchNorm bias
        if residual is not None:                     # real skip connections only
            y = y + residual
        y = jnp.maximum(y, 0.0)                      # ReLU
        y = jnp.where(valid, y, 0.0)                 # zero the garbage columns
        if write_back:
            # Shifted interior store: masked garbage columns land exactly on the
            # zero-border lanes, so the halo stays valid for the next conv.
            for b in range(B):
                dst = b * S + PW + 1
                pad_ref[:, dst:dst + HPW] = y[:, b * S:b * S + HPW]
        return y

    # ---- first_part_conv: conv1 -> bn1 -> ReLU (inserted) ----
    h = conv_bn_relu(0)
    # TODO(synk): x.register_hook(self.activations_hook) captures backward-pass
    # gradients at this point; there is no forward-pass Pallas equivalent.

    # ---- second_part_conv: two residual basic blocks ----
    _ = conv_bn_relu(1)                                  # block1 conv1
    h = conv_bn_relu(2, residual=h)                      # block1 conv2 + skip
    _ = conv_bn_relu(3)                                  # block2 conv1
    h = conv_bn_relu(4, residual=h, write_back=False)    # block2 conv2 + skip

    # ---- adaptive_avg_pool2d((1,1)) -> flatten -> Linear ----
    # 1/(H*W) is folded into fcw, so the pool is a plain (already masked) sum.
    for b in range(B):
        pooled = jnp.sum(h[:, b * S:(b + 1) * S], axis=1, keepdims=True)   # (C,1)
        logits = jnp.sum(pooled * fcw_ref[...], axis=0, keepdims=True)     # (1,128)
        out_ref[b] = (logits + fcb_ref[...]).astype(out_ref.dtype)


# ----------------------------------------------------------------------------
# Wrapper: layout plumbing (NCHW -> lane-dense, BN folding, im2col weights)
# ----------------------------------------------------------------------------
def _pack_conv(w, scale, cin_pad=None):
    # w: (3, 3, ci, co); fold BN scale into output channels and flatten to the
    # im2col layout (co, 9*ci) with ci fastest (matches patch-buffer rows).
    if cin_pad is not None and cin_pad > w.shape[2]:
        w = jnp.pad(w, ((0, 0), (0, 0), (0, cin_pad - w.shape[2]), (0, 0)))
    w = w * scale[None, None, None, :]
    co = w.shape[-1]
    return jnp.transpose(w, (3, 0, 1, 2)).reshape(co, -1)


def resnet_cam_forward(params, x_nchw, batch_block=1):
    N, cin, H, W = x_nchw.shape
    C = params["conv1_w"].shape[-1]                    # working channel count (8)
    ncls = params["fc_w"].shape[-1]
    ncls_pad = ((ncls + LANES - 1) // LANES) * LANES
    PH, PW = H + 2, W + 2
    PHW = PH * PW
    S = ((PHW + LANES - 1) // LANES) * LANES           # per-image lane stride
    B = batch_block
    G = -(-N // B)                                     # grid steps (batch chunks)
    NP = G * B
    L = 5

    # Images: NCHW -> lane-dense (NP, C, S): channels on sublanes, zero-padded
    # spatial flattened onto lanes, channels zero-padded cin -> C.
    x = jnp.transpose(x_nchw, (0, 2, 3, 1)).astype(jnp.float32)      # (N,H,W,cin)
    x = jnp.pad(x, ((0, 0), (1, 1), (1, 1), (0, C - cin)))           # (N,PH,PW,C)
    x = jnp.transpose(x, (0, 3, 1, 2)).reshape(N, C, PHW)            # (N,C,PHW)
    x = jnp.pad(x, ((0, NP - N), (0, 0), (0, S - PHW)))              # (NP,C,S)

    # Conv weights: BN scale folded, im2col layout, stacked per layer.
    b1, b2 = params["block1"], params["block2"]
    conv_w = jnp.stack([
        _pack_conv(params["conv1_w"], params["bn1_s"], cin_pad=C),
        _pack_conv(b1["w1"], b1["s1"]),
        _pack_conv(b1["w2"], b1["s2"]),
        _pack_conv(b2["w1"], b2["s1"]),
        _pack_conv(b2["w2"], b2["s2"]),
    ], axis=0).astype(jnp.float32)                                   # (5, C, 9C)
    biases = jnp.stack(
        [params["bn1_b"], b1["b1"], b1["b2"], b2["b1"], b2["b2"]],
        axis=0).reshape(L, C, 1).astype(jnp.float32)                 # (5, C, 1)

    # FC: fold the 1/(H*W) of the average pool; pad classes to 128 lanes.
    fcw = jnp.pad(params["fc_w"] / float(H * W),
                  ((0, 0), (0, ncls_pad - ncls))).astype(jnp.float32)
    fcb = jnp.pad(params["fc_b"],
                  (0, ncls_pad - ncls)).reshape(1, ncls_pad).astype(jnp.float32)

    # Validity mask over the (C, B*S) conv-output layout: a lane q is valid iff
    # (q mod S) indexes a real output pixel (row < H, col < W of the padded-row
    # stride PW layout).
    p = np.arange(B * S) % S
    mask = ((p < H * PW) & ((p % PW) < W)).astype(np.float32).reshape(1, B * S)
    mask = jnp.asarray(mask)

    kernel = functools.partial(_resnet_cam_kernel, H=H, W=W, C=C, B=B, S=S)

    out = pl.pallas_call(
        kernel,
        out_shape=jax.ShapeDtypeStruct((NP, 1, ncls_pad), jnp.float32),
        grid_spec=pltpu.PrefetchScalarGridSpec(
            num_scalar_prefetch=0,
            grid=(G,),
            in_specs=[
                pl.BlockSpec((B, C, S), lambda g: (g, 0, 0)),        # images
                pl.BlockSpec((L, C, 9 * C), lambda g: (0, 0, 0)),    # conv w
                pl.BlockSpec((L, C, 1), lambda g: (0, 0, 0)),        # bn bias
                pl.BlockSpec((C, ncls_pad), lambda g: (0, 0)),       # fc w
                pl.BlockSpec((1, ncls_pad), lambda g: (0, 0)),       # fc b
                pl.BlockSpec((1, B * S), lambda g: (0, 0)),          # mask
            ],
            out_specs=pl.BlockSpec((B, 1, ncls_pad), lambda g: (g, 0, 0)),
            scratch_shapes=[
                pltpu.VMEM((C, B * S + LANES), jnp.float32),   # padded activations
                pltpu.VMEM((9 * C, B * S), jnp.float32),       # im2col patches
            ],
        ),
        compiler_params=pltpu.CompilerParams(
            dimension_semantics=("parallel",)),   # v7x: 2 TCs split the chunks
    )(x, conv_w, biases, fcw, fcb, mask)

    return out[:N, 0, :ncls]                             # (N, num_classes)


# ----------------------------------------------------------------------------
# Pure-JAX reference (same math, NHWC) — used only for the correctness check.
# ----------------------------------------------------------------------------
def _ref_conv3x3(x, w):
    H, W = x.shape[1], x.shape[2]
    xp = jnp.pad(x, ((0, 0), (1, 1), (1, 1), (0, 0)))
    out = 0.0
    for kh in range(3):
        for kw in range(3):
            out = out + jnp.einsum("nhwc,cd->nhwd",
                                   xp[:, kh:kh + H, kw:kw + W, :], w[kh, kw])
    return out


def ref_forward(params, x_nchw):
    x = jnp.transpose(x_nchw, (0, 2, 3, 1)).astype(jnp.float32)

    def cbr(h, w, s, b, res=None):
        y = _ref_conv3x3(h, w) * s + b
        if res is not None:
            y = y + res
        return jnp.maximum(y, 0.0)

    b1, b2 = params["block1"], params["block2"]
    h = cbr(x, params["conv1_w"], params["bn1_s"], params["bn1_b"])
    t = cbr(h, b1["w1"], b1["s1"], b1["b1"])
    h = cbr(t, b1["w2"], b1["s2"], b1["b2"], res=h)
    t = cbr(h, b2["w1"], b2["s1"], b2["b1"])
    h = cbr(t, b2["w2"], b2["s2"], b2["b2"], res=h)
    pooled = jnp.mean(h, axis=(1, 2))
    return pooled @ params["fc_w"] + params["fc_b"]


# ----------------------------------------------------------------------------
# Parameters (deterministic, synthetic — BN folded into scale/bias)
# ----------------------------------------------------------------------------
def init_params(key, cin=4, c1=8, num_classes=10):
    ks = jax.random.split(key, 12)

    def conv_w(k, ci, co):
        return jax.random.normal(k, (3, 3, ci, co), jnp.float32) / jnp.sqrt(
            3.0 * 3.0 * ci)

    def bn(k, c):
        k1, k2 = jax.random.split(k)
        return (1.0 + 0.1 * jax.random.normal(k1, (c,), jnp.float32),
                0.1 * jax.random.normal(k2, (c,), jnp.float32))

    p = {}
    p["conv1_w"] = conv_w(ks[0], cin, c1)
    p["bn1_s"], p["bn1_b"] = bn(ks[1], c1)
    for name, k0, k1_, k2_, k3_ in (("block1", ks[2], ks[3], ks[4], ks[5]),
                                    ("block2", ks[6], ks[7], ks[8], ks[9])):
        s1, b1 = bn(k1_, c1)
        s2, b2 = bn(k3_, c1)
        p[name] = {"w1": conv_w(k0, c1, c1), "s1": s1, "b1": b1,
                   "w2": conv_w(k2_, c1, c1), "s2": s2, "b2": b2}
    p["fc_w"] = jax.random.normal(ks[10], (c1, num_classes),
                                  jnp.float32) / jnp.sqrt(float(c1))
    p["fc_b"] = 0.1 * jax.random.normal(ks[11], (num_classes,), jnp.float32)
    return p


if __name__ == "__main__":
    key = jax.random.PRNGKey(0)
    kx, kp = jax.random.split(key)
    # PyTorch-style NCHW input: batch=2, channels=4, spatial=16x16
    x = jax.random.normal(kx, (2, 4, 16, 16), jnp.float32)
    params = init_params(kp)

    fwd_b1 = jax.jit(functools.partial(resnet_cam_forward, batch_block=1))
    fwd_b2 = jax.jit(functools.partial(resnet_cam_forward, batch_block=2))
    out1 = jax.block_until_ready(fwd_b1(params, x))   # grid=(2,): v7x 2-TC path
    out2 = jax.block_until_ready(fwd_b2(params, x))   # grid=(1,): v5e/v6e batched path
    ref = jax.block_until_ready(jax.jit(ref_forward)(params, x))

    assert out1.shape == (2, 10) and out1.dtype == jnp.float32
    np.testing.assert_allclose(np.asarray(out1), np.asarray(out2),
                               rtol=1e-4, atol=1e-4)
    np.testing.assert_allclose(np.asarray(out1), np.asarray(ref),
                               rtol=5e-2, atol=1e-1)   # bf16 conv operands
    print("KERNEL_OK")
</pallas_src>

<mosaic_0001>
module attributes {stable_mosaic.version = 11 : i64} {
  func.func @_resnet_cam_kernel(%arg0: i32, %arg1: memref<1x8x384xf32, #tpu.memory_space<vmem>>, %arg2: memref<5x8x72xf32, #tpu.memory_space<vmem>>, %arg3: memref<5x8x1xf32, #tpu.memory_space<vmem>>, %arg4: memref<8x128xf32, #tpu.memory_space<vmem>>, %arg5: memref<1x128xf32, #tpu.memory_space<vmem>>, %arg6: memref<1x384xf32, #tpu.memory_space<vmem>>, %arg7: memref<1x1x128xf32, #tpu.memory_space<vmem>>, %arg8: memref<8x512xf32, #tpu.memory_space<vmem>>, %arg9: memref<72x384xf32, #tpu.memory_space<vmem>>) attributes {dimension_semantics = [#tpu.dimension_semantics<parallel>], iteration_bounds = array<i64: 2>, scalar_prefetch = 0 : i64, scratch_operands = 2 : i64, tpu.core_type = #tpu.core_type<tc>, window_params = [{transform_indices = @transform_0, window_bounds = array<i64: 1, 8, 384>}, {pipeline_mode = #tpu.pipeline_mode<synchronous>, transform_indices = @transform_1, window_bounds = array<i64: 5, 8, 72>}, {pipeline_mode = #tpu.pipeline_mode<synchronous>, transform_indices = @transform_2, window_bounds = array<i64: 5, 8, 1>}, {pipeline_mode = #tpu.pipeline_mode<synchronous>, transform_indices = @transform_3, window_bounds = array<i64: 8, 128>}, {pipeline_mode = #tpu.pipeline_mode<synchronous>, transform_indices = @transform_4, window_bounds = array<i64: 1, 128>}, {pipeline_mode = #tpu.pipeline_mode<synchronous>, transform_indices = @transform_5, window_bounds = array<i64: 1, 384>}, {transform_indices = @transform_6, window_bounds = array<i64: 1, 1, 128>}]} {
    %c0 = arith.constant 0 : index
    %c0_0 = arith.constant 0 : index
    %c0_1 = arith.constant 0 : index
    %0 = vector.load %arg1[%c0, %c0_0, %c0_1] : memref<1x8x384xf32, #tpu.memory_space<vmem>>, vector<1x8x384xf32>
    %1 = vector.shape_cast %0 : vector<1x8x384xf32> to vector<8x384xf32>
    %c0_2 = arith.constant 0 : index
    %c0_3 = arith.constant 0 : index
    %2 = vector.load %arg8[%c0_2, %c0_3] : memref<8x512xf32, #tpu.memory_space<vmem>>, vector<8x384xf32>
    tpu.vector_store %arg8[%c0_2, %c0_3], %1 {strides = array<i32>} : memref<8x512xf32, #tpu.memory_space<vmem>>, vector<8x384xf32>,
    %cst = arith.constant 0.000000e+00 : f32
    %3 = vector.broadcast %cst : f32 to vector<8x128xf32>
    %c0_4 = arith.constant 0 : index
    %c384 = arith.constant 384 : index
    %4 = vector.load %arg8[%c0_4, %c384] : memref<8x512xf32, #tpu.memory_space<vmem>>, vector<8x128xf32>
    tpu.vector_store %arg8[%c0_4, %c384], %3 {strides = array<i32>} : memref<8x512xf32, #tpu.memory_space<vmem>>, vector<8x128xf32>,
    %c0_5 = arith.constant 0 : index
    %c0_6 = arith.constant 0 : index
    %5 = vector.load %arg6[%c0_5, %c0_6] : memref<1x384xf32, #tpu.memory_space<vmem>>, vector<1x384xf32>
    %cst_7 = arith.constant 0.000000e+00 : f32
    %6 = vector.broadcast %cst_7 : f32 to vector<1x384xf32>
    %7 = arith.cmpf one, %5, %6 : vector<1x384xf32>
    %c0_8 = arith.constant 0 : index
    %c0_9 = arith.constant 0 : index
    %8 = vector.load %arg8[%c0_8, %c0_9] : memref<8x512xf32, #tpu.memory_space<vmem>>, vector<8x384xf32>
    %c0_10 = arith.constant 0 : index
    %c0_11 = arith.constant 0 : index
    %9 = vector.load %arg9[%c0_10, %c0_11] : memref<72x384xf32, #tpu.memory_space<vmem>>, vector<8x384xf32>
    tpu.vector_store %arg9[%c0_10, %c0_11], %8 {strides = array<i32>} : memref<72x384xf32, #tpu.memory_space<vmem>>, vector<8x384xf32>,
    %c0_12 = arith.constant 0 : index
    %c1 = arith.constant 1 : index
    %10 = vector.load %arg8[%c0_12, %c1] : memref<8x512xf32, #tpu.memory_space<vmem>>, vector<8x384xf32>
    %c8 = arith.constant 8 : index
    %c0_13 = arith.constant 0 : index
    %11 = vector.load %arg9[%c8, %c0_13] : memref<72x384xf32, #tpu.memory_space<vmem>>, vector<8x384xf32>
    tpu.vector_store %arg9[%c8, %c0_13], %10 {strides = array<i32>} : memref<72x384xf32, #tpu.memory_space<vmem>>, vector<8x384xf32>,
    %c0_14 = arith.constant 0 : index
    %c2 = arith.constant 2 : index
    %12 = vector.load %arg8[%c0_14, %c2] : memref<8x512xf32, #tpu.memory_space<vmem>>, vector<8x384xf32>
    %c16 = arith.constant 16 : index
    %c0_15 = arith.constant 0 : index
    %13 = vector.load %arg9[%c16, %c0_15] : memref<72x384xf32, #tpu.memory_space<vmem>>, vector<8x384xf32>
    tpu.vector_store %arg9[%c16, %c0_15], %12 {strides = array<i32>} : memref<72x384xf32, #tpu.memory_space<vmem>>, vector<8x384xf32>,
    %c0_16 = arith.constant 0 : index
    %c18 = arith.constant 18 : index
    %14 = vector.load %arg8[%c0_16, %c18] : memref<8x512xf32, #tpu.memory_space<vmem>>, vector<8x384xf32>
    %c24 = arith.constant 24 : index
    %c0_17 = arith.constant 0 : index
    %15 = vector.load %arg9[%c24, %c0_17] : memref<72x384xf32, #tpu.memory_space<vmem>>, vector<8x384xf32>
    tpu.vector_store %arg9[%c24, %c0_17], %14 {strides = array<i32>} : memref<72x384xf32, #tpu.memory_space<vmem>>, vector<8x384xf32>,
    %c0_18 = arith.constant 0 : index
    %c19 = arith.constant 19 : index
    %16 = vector.load %arg8[%c0_18, %c19] : memref<8x512xf32, #tpu.memory_space<vmem>>, vector<8x384xf32>
    %c32 = arith.constant 32 : index
    %c0_19 = arith.constant 0 : index
    %17 = vector.load %arg9[%c32, %c0_19] : memref<72x384xf32, #tpu.memory_space<vmem>>, vector<8x384xf32>
    tpu.vector_store %arg9[%c32, %c0_19], %16 {strides = array<i32>} : memref<72x384xf32, #tpu.memory_space<vmem>>, vector<8x384xf32>,
    %c0_20 = arith.constant 0 : index
    %c20 = arith.constant 20 : index
    %18 = vector.load %arg8[%c0_20, %c20] : memref<8x512xf32, #tpu.memory_space<vmem>>, vector<8x384xf32>
    %c40 = arith.constant 40 : index
    %c0_21 = arith.constant 0 : index
    %19 = vector.load %arg9[%c40, %c0_21] : memref<72x384xf32, #tpu.memory_space<vmem>>, vector<8x384xf32>
    tpu.vector_store %arg9[%c40, %c0_21], %18 {strides = array<i32>} : memref<72x384xf32, #tpu.memory_space<vmem>>, vector<8x384xf32>,
    %c0_22 = arith.constant 0 : index
    %c36 = arith.constant 36 : index
    %20 = vector.load %arg8[%c0_22, %c36] : memref<8x512xf32, #tpu.memory_space<vmem>>, vector<8x384xf32>
    %c48 = arith.constant 48 : index
    %c0_23 = arith.constant 0 : index
    %21 = vector.load %arg9[%c48, %c0_23] : memref<72x384xf32, #tpu.memory_space<vmem>>, vector<8x384xf32>
    tpu.vector_store %arg9[%c48, %c0_23], %20 {strides = array<i32>} : memref<72x384xf32, #tpu.memory_space<vmem>>, vector<8x384xf32>,
    %c0_24 = arith.constant 0 : index
    %c37 = arith.constant 37 : index
    %22 = vector.load %arg8[%c0_24, %c37] : memref<8x512xf32, #tpu.memory_space<vmem>>, vector<8x384xf32>
    %c56 = arith.constant 56 : index
    %c0_25 = arith.constant 0 : index
    %23 = vector.load %arg9[%c56, %c0_25] : memref<72x384xf32, #tpu.memory_space<vmem>>, vector<8x384xf32>
    tpu.vector_store %arg9[%c56, %c0_25], %22 {strides = array<i32>} : memref<72x384xf32, #tpu.memory_space<vmem>>, vector<8x384xf32>,
    %c0_26 = arith.constant 0 : index
    %c38 = arith.constant 38 : index
    %24 = vector.load %arg8[%c0_26, %c38] : memref<8x512xf32, #tpu.memory_space<vmem>>, vector<8x384xf32>
    %c64 = arith.constant 64 : index
    %c0_27 = arith.constant 0 : index
    %25 = vector.load %arg9[%c64, %c0_27] : memref<72x384xf32, #tpu.memory_space<vmem>>, vector<8x384xf32>
    tpu.vector_store %arg9[%c64, %c0_27], %24 {strides = array<i32>} : memref<72x384xf32, #tpu.memory_space<vmem>>, vector<8x384xf32>,
    %c0_28 = arith.constant 0 : index
    %c0_29 = arith.constant 0 : index
    %c0_30 = arith.constant 0 : index
    %26 = vector.load %arg2[%c0_28, %c0_29, %c0_30] : memref<5x8x72xf32, #tpu.memory_space<vmem>>, vector<1x8x72xf32>
    %27 = vector.shape_cast %26 : vector<1x8x72xf32> to vector<8x72xf32>
    %28 = arith.truncf %27 : vector<8x72xf32> to vector<8x72xbf16>
    %c0_31 = arith.constant 0 : index
    %c0_32 = arith.constant 0 : index
    %29 = vector.load %arg9[%c0_31, %c0_32] : memref<72x384xf32, #tpu.memory_space<vmem>>, vector<72x384xf32>
    %30 = arith.truncf %29 : vector<72x384xf32> to vector<72x384xbf16>
    %cst_33 = arith.constant dense<0.000000e+00> : vector<8x384xf32>
    %31 = tpu.matmul %28, %30, %cst_33 {dimension_numbers = #tpu.dot_dimension_numbers<[1], [0], [0], [1], [0, 0, 1, 1], [], []>} : vector<8x72xbf16>, vector<72x384xbf16>, vector<8x384xf32> -> vector<8x384xf32>
    %c0_34 = arith.constant 0 : index
    %c0_35 = arith.constant 0 : index
    %c0_36 = arith.constant 0 : index
    %32 = vector.load %arg3[%c0_34, %c0_35, %c0_36] : memref<5x8x1xf32, #tpu.memory_space<vmem>>, vector<1x8x1xf32>
    %33 = vector.shape_cast %32 : vector<1x8x1xf32> to vector<8x1xf32>
    %34 = vector.broadcast %33 : vector<8x1xf32> to vector<8x384xf32>
    %35 = arith.addf %31, %34 : vector<8x384xf32>
    %cst_37 = arith.constant 0.000000e+00 : f32
    %36 = vector.broadcast %cst_37 : f32 to vector<8x384xf32>
    %37 = arith.maximumf %35, %36 : vector<8x384xf32>
    %cst_38 = arith.constant 0.000000e+00 : f32
    %38 = vector.shape_cast %7 : vector<1x384xi1> to vector<1x384xi1>
    %39 = vector.broadcast %38 : vector<1x384xi1> to vector<8x384xi1>
    %40 = vector.broadcast %cst_38 : f32 to vector<8x384xf32>
    %41 = arith.select %39, %37, %40 : vector<8x384xi1>, vector<8x384xf32>
    %42 = vector.extract_strided_slice %41 {offsets = [0, 0], sizes = [8, 288], strides = [1, 1]} : vector<8x384xf32> to vector<8x288xf32>
    %c0_39 = arith.constant 0 : index
    %c19_40 = arith.constant 19 : index
    %43 = vector.load %arg8[%c0_39, %c19_40] : memref<8x512xf32, #tpu.memory_space<vmem>>, vector<8x288xf32>
    tpu.vector_store %arg8[%c0_39, %c19_40], %42 {strides = array<i32>} : memref<8x512xf32, #tpu.memory_space<vmem>>, vector<8x288xf32>,
    %c0_41 = arith.constant 0 : index
    %c0_42 = arith.constant 0 : index
    %44 = vector.load %arg8[%c0_41, %c0_42] : memref<8x512xf32, #tpu.memory_space<vmem>>, vector<8x384xf32>
    %c0_43 = arith.constant 0 : index
    %c0_44 = arith.constant 0 : index
    %45 = vector.load %arg9[%c0_43, %c0_44] : memref<72x384xf32, #tpu.memory_space<vmem>>, vector<8x384xf32>
    tpu.vector_store %arg9[%c0_43, %c0_44], %44 {strides = array<i32>} : memref<72x384xf32, #tpu.memory_space<vmem>>, vector<8x384xf32>,
    %c0_45 = arith.constant 0 : index
    %c1_46 = arith.constant 1 : index
    %46 = vector.load %arg8[%c0_45, %c1_46] : memref<8x512xf32, #tpu.memory_space<vmem>>, vector<8x384xf32>
    %c8_47 = arith.constant 8 : index
    %c0_48 = arith.constant 0 : index
    %47 = vector.load %arg9[%c8_47, %c0_48] : memref<72x384xf32, #tpu.memory_space<vmem>>, vector<8x384xf32>
    tpu.vector_store %arg9[%c8_47, %c0_48], %46 {strides = array<i32>} : memref<72x384xf32, #tpu.memory_space<vmem>>, vector<8x384xf32>,
    %c0_49 = arith.constant 0 : index
    %c2_50 = arith.constant 2 : index
    %48 = vector.load %arg8[%c0_49, %c2_50] : memref<8x512xf32, #tpu.memory_space<vmem>>, vector<8x384xf32>
    %c16_51 = arith.constant 16 : index
    %c0_52 = arith.constant 0 : index
    %49 = vector.load %arg9[%c16_51, %c0_52] : memref<72x384xf32, #tpu.memory_space<vmem>>, vector<8x384xf32>
    tpu.vector_store %arg9[%c16_51, %c0_52], %48 {strides = array<i32>} : memref<72x384xf32, #tpu.memory_space<vmem>>, vector<8x384xf32>,
    %c0_53 = arith.constant 0 : index
    %c18_54 = arith.constant 18 : index
    %50 = vector.load %arg8[%c0_53, %c18_54] : memref<8x512xf32, #tpu.memory_space<vmem>>, vector<8x384xf32>
    %c24_55 = arith.constant 24 : index
    %c0_56 = arith.constant 0 : index
    %51 = vector.load %arg9[%c24_55, %c0_56] : memref<72x384xf32, #tpu.memory_space<vmem>>, vector<8x384xf32>
    tpu.vector_store %arg9[%c24_55, %c0_56], %50 {strides = array<i32>} : memref<72x384xf32, #tpu.memory_space<vmem>>, vector<8x384xf32>,
    %c0_57 = arith.constant 0 : index
    %c19_58 = arith.constant 19 : index
    %52 = vector.load %arg8[%c0_57, %c19_58] : memref<8x512xf32, #tpu.memory_space<vmem>>, vector<8x384xf32>
    %c32_59 = arith.constant 32 : index
    %c0_60 = arith.constant 0 : index
    %53 = vector.load %arg9[%c32_59, %c0_60] : memref<72x384xf32, #tpu.memory_space<vmem>>, vector<8x384xf32>
    tpu.vector_store %arg9[%c32_59, %c0_60], %52 {strides = array<i32>} : memref<72x384xf32, #tpu.memory_space<vmem>>, vector<8x384xf32>,
    %c0_61 = arith.constant 0 : index
    %c20_62 = arith.constant 20 : index
    %54 = vector.load %arg8[%c0_61, %c20_62] : memref<8x512xf32, #tpu.memory_space<vmem>>, vector<8x384xf32>
    %c40_63 = arith.constant 40 : index
    %c0_64 = arith.constant 0 : index
    %55 = vector.load %arg9[%c40_63, %c0_64] : memref<72x384xf32, #tpu.memory_space<vmem>>, vector<8x384xf32>
    tpu.vector_store %arg9[%c40_63, %c0_64], %54 {strides = array<i32>} : memref<72x384xf32, #tpu.memory_space<vmem>>, vector<8x384xf32>,
    %c0_65 = arith.constant 0 : index
    %c36_66 = arith.constant 36 : index
    %56 = vector.load %arg8[%c0_65, %c36_66] : memref<8x512xf32, #tpu.memory_space<vmem>>, vector<8x384xf32>
    %c48_67 = arith.constant 48 : index
    %c0_68 = arith.constant 0 : index
    %57 = vector.load %arg9[%c48_67, %c0_68] : memref<72x384xf32, #tpu.memory_space<vmem>>, vector<8x384xf32>
    tpu.vector_store %arg9[%c48_67, %c0_68], %56 {strides = array<i32>} : memref<72x384xf32, #tpu.memory_space<vmem>>, vector<8x384xf32>,
    %c0_69 = arith.constant 0 : index
    %c37_70 = arith.constant 37 : index
    %58 = vector.load %arg8[%c0_69, %c37_70] : memref<8x512xf32, #tpu.memory_space<vmem>>, vector<8x384xf32>
    %c56_71 = arith.constant 56 : index
    %c0_72 = arith.constant 0 : index
    %59 = vector.load %arg9[%c56_71, %c0_72] : memref<72x384xf32, #tpu.memory_space<vmem>>, vector<8x384xf32>
    tpu.vector_store %arg9[%c56_71, %c0_72], %58 {strides = array<i32>} : memref<72x384xf32, #tpu.memory_space<vmem>>, vector<8x384xf32>,
    %c0_73 = arith.constant 0 : index
    %c38_74 = arith.constant 38 : index
    %60 = vector.load %arg8[%c0_73, %c38_74] : memref<8x512xf32, #tpu.memory_space<vmem>>, vector<8x384xf32>
    %c64_75 = arith.constant 64 : index
    %c0_76 = arith.constant 0 : index
    %61 = vector.load %arg9[%c64_75, %c0_76] : memref<72x384xf32, #tpu.memory_space<vmem>>, vector<8x384xf32>
    tpu.vector_store %arg9[%c64_75, %c0_76], %60 {strides = array<i32>} : memref<72x384xf32, #tpu.memory_space<vmem>>, vector<8x384xf32>,
    %c1_77 = arith.constant 1 : index
    %c0_78 = arith.constant 0 : index
    %c0_79 = arith.constant 0 : index
    %62 = vector.load %arg2[%c1_77, %c0_78, %c0_79] : memref<5x8x72xf32, #tpu.memory_space<vmem>>, vector<1x8x72xf32>
    %63 = vector.shape_cast %62 : vector<1x8x72xf32> to vector<8x72xf32>
    %64 = arith.truncf %63 : vector<8x72xf32> to vector<8x72xbf16>
    %c0_80 = arith.constant 0 : index
    %c0_81 = arith.constant 0 : index
    %65 = vector.load %arg9[%c0_80, %c0_81] : memref<72x384xf32, #tpu.memory_space<vmem>>, vector<72x384xf32>
    %66 = arith.truncf %65 : vector<72x384xf32> to vector<72x384xbf16>
    %cst_82 = arith.constant dense<0.000000e+00> : vector<8x384xf32>
    %67 = tpu.matmul %64, %66, %cst_82 {dimension_numbers = #tpu.dot_dimension_numbers<[1], [0], [0], [1], [0, 0, 1, 1], [], []>} : vector<8x72xbf16>, vector<72x384xbf16>, vector<8x384xf32> -> vector<8x384xf32>
    %c1_83 = arith.constant 1 : index
    %c0_84 = arith.constant 0 : index
    %c0_85 = arith.constant 0 : index
    %68 = vector.load %arg3[%c1_83, %c0_84, %c0_85] : memref<5x8x1xf32, #tpu.memory_space<vmem>>, vector<1x8x1xf32>
    %69 = vector.shape_cast %68 : vector<1x8x1xf32> to vector<8x1xf32>
    %70 = vector.broadcast %69 : vector<8x1xf32> to vector<8x384xf32>
    %71 = arith.addf %67, %70 : vector<8x384xf32>
    %cst_86 = arith.constant 0.000000e+00 : f32
    %72 = vector.broadcast %cst_86 : f32 to vector<8x384xf32>
    %73 = arith.maximumf %71, %72 : vector<8x384xf32>
    %cst_87 = arith.constant 0.000000e+00 : f32
    %74 = vector.shape_cast %7 : vector<1x384xi1> to vector<1x384xi1>
    %75 = vector.broadcast %74 : vector<1x384xi1> to vector<8x384xi1>
    %76 = vector.broadcast %cst_87 : f32 to vector<8x384xf32>
    %77 = arith.select %75, %73, %76 : vector<8x384xi1>, vector<8x384xf32>
    %78 = vector.extract_strided_slice %77 {offsets = [0, 0], sizes = [8, 288], strides = [1, 1]} : vector<8x384xf32> to vector<8x288xf32>
    %c0_88 = arith.constant 0 : index
    %c19_89 = arith.constant 19 : index
    %79 = vector.load %arg8[%c0_88, %c19_89] : memref<8x512xf32, #tpu.memory_space<vmem>>, vector<8x288xf32>
    tpu.vector_store %arg8[%c0_88, %c19_89], %78 {strides = array<i32>} : memref<8x512xf32, #tpu.memory_space<vmem>>, vector<8x288xf32>,
    %c0_90 = arith.constant 0 : index
    %c0_91 = arith.constant 0 : index
    %80 = vector.load %arg8[%c0_90, %c0_91] : memref<8x512xf32, #tpu.memory_space<vmem>>, vector<8x384xf32>
    %c0_92 = arith.constant 0 : index
    %c0_93 = arith.constant 0 : index
    %81 = vector.load %arg9[%c0_92, %c0_93] : memref<72x384xf32, #tpu.memory_space<vmem>>, vector<8x384xf32>
    tpu.vector_store %arg9[%c0_92, %c0_93], %80 {strides = array<i32>} : memref<72x384xf32, #tpu.memory_space<vmem>>, vector<8x384xf32>,
    %c0_94 = arith.constant 0 : index
    %c1_95 = arith.constant 1 : index
    %82 = vector.load %arg8[%c0_94, %c1_95] : memref<8x512xf32, #tpu.memory_space<vmem>>, vector<8x384xf32>
    %c8_96 = arith.constant 8 : index
    %c0_97 = arith.constant 0 : index
    %83 = vector.load %arg9[%c8_96, %c0_97] : memref<72x384xf32, #tpu.memory_space<vmem>>, vector<8x384xf32>
    tpu.vector_store %arg9[%c8_96, %c0_97], %82 {strides = array<i32>} : memref<72x384xf32, #tpu.memory_space<vmem>>, vector<8x384xf32>,
    %c0_98 = arith.constant 0 : index
    %c2_99 = arith.constant 2 : index
    %84 = vector.load %arg8[%c0_98, %c2_99] : memref<8x512xf32, #tpu.memory_space<vmem>>, vector<8x384xf32>
    %c16_100 = arith.constant 16 : index
    %c0_101 = arith.constant 0 : index
    %85 = vector.load %arg9[%c16_100, %c0_101] : memref<72x384xf32, #tpu.memory_space<vmem>>, vector<8x384xf32>
    tpu.vector_store %arg9[%c16_100, %c0_101], %84 {strides = array<i32>} : memref<72x384xf32, #tpu.memory_space<vmem>>, vector<8x384xf32>,
    %c0_102 = arith.constant 0 : index
    %c18_103 = arith.constant 18 : index
    %86 = vector.load %arg8[%c0_102, %c18_103] : memref<8x512xf32, #tpu.memory_space<vmem>>, vector<8x384xf32>
    %c24_104 = arith.constant 24 : index
    %c0_105 = arith.constant 0 : index
    %87 = vector.load %arg9[%c24_104, %c0_105] : memref<72x384xf32, #tpu.memory_space<vmem>>, vector<8x384xf32>
    tpu.vector_store %arg9[%c24_104, %c0_105], %86 {strides = array<i32>} : memref<72x384xf32, #tpu.memory_space<vmem>>, vector<8x384xf32>,
    %c0_106 = arith.constant 0 : index
    %c19_107 = arith.constant 19 : index
    %88 = vector.load %arg8[%c0_106, %c19_107] : memref<8x512xf32, #tpu.memory_space<vmem>>, vector<8x384xf32>
    %c32_108 = arith.constant 32 : index
    %c0_109 = arith.constant 0 : index
    %89 = vector.load %arg9[%c32_108, %c0_109] : memref<72x384xf32, #tpu.memory_space<vmem>>, vector<8x384xf32>
    tpu.vector_store %arg9[%c32_108, %c0_109], %88 {strides = array<i32>} : memref<72x384xf32, #tpu.memory_space<vmem>>, vector<8x384xf32>,
    %c0_110 = arith.constant 0 : index
    %c20_111 = arith.constant 20 : index
    %90 = vector.load %arg8[%c0_110, %c20_111] : memref<8x512xf32, #tpu.memory_space<vmem>>, vector<8x384xf32>
    %c40_112 = arith.constant 40 : index
    %c0_113 = arith.constant 0 : index
    %91 = vector.load %arg9[%c40_112, %c0_113] : memref<72x384xf32, #tpu.memory_space<vmem>>, vector<8x384xf32>
    tpu.vector_store %arg9[%c40_112, %c0_113], %90 {strides = array<i32>} : memref<72x384xf32, #tpu.memory_space<vmem>>, vector<8x384xf32>,
    %c0_114 = arith.constant 0 : index
    %c36_115 = arith.constant 36 : index
    %92 = vector.load %arg8[%c0_114, %c36_115] : memref<8x512xf32, #tpu.memory_space<vmem>>, vector<8x384xf32>
    %c48_116 = arith.constant 48 : index
    %c0_117 = arith.constant 0 : index
    %93 = vector.load %arg9[%c48_116, %c0_117] : memref<72x384xf32, #tpu.memory_space<vmem>>, vector<8x384xf32>
    tpu.vector_store %arg9[%c48_116, %c0_117], %92 {strides = array<i32>} : memref<72x384xf32, #tpu.memory_space<vmem>>, vector<8x384xf32>,
    %c0_118 = arith.constant 0 : index
    %c37_119 = arith.constant 37 : index
    %94 = vector.load %arg8[%c0_118, %c37_119] : memref<8x512xf32, #tpu.memory_space<vmem>>, vector<8x384xf32>
    %c56_120 = arith.constant 56 : index
    %c0_121 = arith.constant 0 : index
    %95 = vector.load %arg9[%c56_120, %c0_121] : memref<72x384xf32, #tpu.memory_space<vmem>>, vector<8x384xf32>
    tpu.vector_store %arg9[%c56_120, %c0_121], %94 {strides = array<i32>} : memref<72x384xf32, #tpu.memory_space<vmem>>, vector<8x384xf32>,
    %c0_122 = arith.constant 0 : index
    %c38_123 = arith.constant 38 : index
    %96 = vector.load %arg8[%c0_122, %c38_123] : memref<8x512xf32, #tpu.memory_space<vmem>>, vector<8x384xf32>
    %c64_124 = arith.constant 64 : index
    %c0_125 = arith.constant 0 : index
    %97 = vector.load %arg9[%c64_124, %c0_125] : memref<72x384xf32, #tpu.memory_space<vmem>>, vector<8x384xf32>
    tpu.vector_store %arg9[%c64_124, %c0_125], %96 {strides = array<i32>} : memref<72x384xf32, #tpu.memory_space<vmem>>, vector<8x384xf32>,
    %c2_126 = arith.constant 2 : index
    %c0_127 = arith.constant 0 : index
    %c0_128 = arith.constant 0 : index
    %98 = vector.load %arg2[%c2_126, %c0_127, %c0_128] : memref<5x8x72xf32, #tpu.memory_space<vmem>>, vector<1x8x72xf32>
    %99 = vector.shape_cast %98 : vector<1x8x72xf32> to vector<8x72xf32>
    %100 = arith.truncf %99 : vector<8x72xf32> to vector<8x72xbf16>
    %c0_129 = arith.constant 0 : index
    %c0_130 = arith.constant 0 : index
    %101 = vector.load %arg9[%c0_129, %c0_130] : memref<72x384xf32, #tpu.memory_space<vmem>>, vector<72x384xf32>
    %102 = arith.truncf %101 : vector<72x384xf32> to vector<72x384xbf16>
    %cst_131 = arith.constant dense<0.000000e+00> : vector<8x384xf32>
    %103 = tpu.matmul %100, %102, %cst_131 {dimension_numbers = #tpu.dot_dimension_numbers<[1], [0], [0], [1], [0, 0, 1, 1], [], []>} : vector<8x72xbf16>, vector<72x384xbf16>, vector<8x384xf32> -> vector<8x384xf32>
    %c2_132 = arith.constant 2 : index
    %c0_133 = arith.constant 0 : index
    %c0_134 = arith.constant 0 : index
    %104 = vector.load %arg3[%c2_132, %c0_133, %c0_134] : memref<5x8x1xf32, #tpu.memory_space<vmem>>, vector<1x8x1xf32>
    %105 = vector.shape_cast %104 : vector<1x8x1xf32> to vector<8x1xf32>
    %106 = vector.broadcast %105 : vector<8x1xf32> to vector<8x384xf32>
    %107 = arith.addf %103, %106 : vector<8x384xf32>
    %108 = arith.addf %107, %41 : vector<8x384xf32>
    %cst_135 = arith.constant 0.000000e+00 : f32
    %109 = vector.broadcast %cst_135 : f32 to vector<8x384xf32>
    %110 = arith.maximumf %108, %109 : vector<8x384xf32>
    %cst_136 = arith.constant 0.000000e+00 : f32
    %111 = vector.shape_cast %7 : vector<1x384xi1> to vector<1x384xi1>
    %112 = vector.broadcast %111 : vector<1x384xi1> to vector<8x384xi1>
    %113 = vector.broadcast %cst_136 : f32 to vector<8x384xf32>
    %114 = arith.select %112, %110, %113 : vector<8x384xi1>, vector<8x384xf32>
    %115 = vector.extract_strided_slice %114 {offsets = [0, 0], sizes = [8, 288], strides = [1, 1]} : vector<8x384xf32> to vector<8x288xf32>
    %c0_137 = arith.constant 0 : index
    %c19_138 = arith.constant 19 : index
    %116 = vector.load %arg8[%c0_137, %c19_138] : memref<8x512xf32, #tpu.memory_space<vmem>>, vector<8x288xf32>
    tpu.vector_store %arg8[%c0_137, %c19_138], %115 {strides = array<i32>} : memref<8x512xf32, #tpu.memory_space<vmem>>, vector<8x288xf32>,
    %c0_139 = arith.constant 0 : index
    %c0_140 = arith.constant 0 : index
    %117 = vector.load %arg8[%c0_139, %c0_140] : memref<8x512xf32, #tpu.memory_space<vmem>>, vector<8x384xf32>
    %c0_141 = arith.constant 0 : index
    %c0_142 = arith.constant 0 : index
    %118 = vector.load %arg9[%c0_141, %c0_142] : memref<72x384xf32, #tpu.memory_space<vmem>>, vector<8x384xf32>
    tpu.vector_store %arg9[%c0_141, %c0_142], %117 {strides = array<i32>} : memref<72x384xf32, #tpu.memory_space<vmem>>, vector<8x384xf32>,
    %c0_143 = arith.constant 0 : index
    %c1_144 = arith.constant 1 : index
    %119 = vector.load %arg8[%c0_143, %c1_144] : memref<8x512xf32, #tpu.memory_space<vmem>>, vector<8x384xf32>
    %c8_145 = arith.constant 8 : index
    %c0_146 = arith.constant 0 : index
    %120 = vector.load %arg9[%c8_145, %c0_146] : memref<72x384xf32, #tpu.memory_space<vmem>>, vector<8x384xf32>
    tpu.vector_store %arg9[%c8_145, %c0_146], %119 {strides = array<i32>} : memref<72x384xf32, #tpu.memory_space<vmem>>, vector<8x384xf32>,
    %c0_147 = arith.constant 0 : index
    %c2_148 = arith.constant 2 : index
    %121 = vector.load %arg8[%c0_147, %c2_148] : memref<8x512xf32, #tpu.memory_space<vmem>>, vector<8x384xf32>
    %c16_149 = arith.constant 16 : index
    %c0_150 = arith.constant 0 : index
    %122 = vector.load %arg9[%c16_149, %c0_150] : memref<72x384xf32, #tpu.memory_space<vmem>>, vector<8x384xf32>
    tpu.vector_store %arg9[%c16_149, %c0_150], %121 {strides = array<i32>} : memref<72x384xf32, #tpu.memory_space<vmem>>, vector<8x384xf32>,
    %c0_151 = arith.constant 0 : index
    %c18_152 = arith.constant 18 : index
    %123 = vector.load %arg8[%c0_151, %c18_152] : memref<8x512xf32, #tpu.memory_space<vmem>>, vector<8x384xf32>
    %c24_153 = arith.constant 24 : index
    %c0_154 = arith.constant 0 : index
    %124 = vector.load %arg9[%c24_153, %c0_154] : memref<72x384xf32, #tpu.memory_space<vmem>>, vector<8x384xf32>
    tpu.vector_store %arg9[%c24_153, %c0_154], %123 {strides = array<i32>} : memref<72x384xf32, #tpu.memory_space<vmem>>, vector<8x384xf32>,
    %c0_155 = arith.constant 0 : index
    %c19_156 = arith.constant 19 : index
    %125 = vector.load %arg8[%c0_155, %c19_156] : memref<8x512xf32, #tpu.memory_space<vmem>>, vector<8x384xf32>
    %c32_157 = arith.constant 32 : index
    %c0_158 = arith.constant 0 : index
    %126 = vector.load %arg9[%c32_157, %c0_158] : memref<72x384xf32, #tpu.memory_space<vmem>>, vector<8x384xf32>
    tpu.vector_store %arg9[%c32_157, %c0_158], %125 {strides = array<i32>} : memref<72x384xf32, #tpu.memory_space<vmem>>, vector<8x384xf32>,
    %c0_159 = arith.constant 0 : index
    %c20_160 = arith.constant 20 : index
    %127 = vector.load %arg8[%c0_159, %c20_160] : memref<8x512xf32, #tpu.memory_space<vmem>>, vector<8x384xf32>
    %c40_161 = arith.constant 40 : index
    %c0_162 = arith.constant 0 : index
    %128 = vector.load %arg9[%c40_161, %c0_162] : memref<72x384xf32, #tpu.memory_space<vmem>>, vector<8x384xf32>
    tpu.vector_store %arg9[%c40_161, %c0_162], %127 {strides = array<i32>} : memref<72x384xf32, #tpu.memory_space<vmem>>, vector<8x384xf32>,
    %c0_163 = arith.constant 0 : index
    %c36_164 = arith.constant 36 : index
    %129 = vector.load %arg8[%c0_163, %c36_164] : memref<8x512xf32, #tpu.memory_space<vmem>>, vector<8x384xf32>
    %c48_165 = arith.constant 48 : index
    %c0_166 = arith.constant 0 : index
    %130 = vector.load %arg9[%c48_165, %c0_166] : memref<72x384xf32, #tpu.memory_space<vmem>>, vector<8x384xf32>
    tpu.vector_store %arg9[%c48_165, %c0_166], %129 {strides = array<i32>} : memref<72x384xf32, #tpu.memory_space<vmem>>, vector<8x384xf32>,
    %c0_167 = arith.constant 0 : index
    %c37_168 = arith.constant 37 : index
    %131 = vector.load %arg8[%c0_167, %c37_168] : memref<8x512xf32, #tpu.memory_space<vmem>>, vector<8x384xf32>
    %c56_169 = arith.constant 56 : index
    %c0_170 = arith.constant 0 : index
    %132 = vector.load %arg9[%c56_169, %c0_170] : memref<72x384xf32, #tpu.memory_space<vmem>>, vector<8x384xf32>
    tpu.vector_store %arg9[%c56_169, %c0_170], %131 {strides = array<i32>} : memref<72x384xf32, #tpu.memory_space<vmem>>, vector<8x384xf32>,
    %c0_171 = arith.constant 0 : index
    %c38_172 = arith.constant 38 : index
    %133 = vector.load %arg8[%c0_171, %c38_172] : memref<8x512xf32, #tpu.memory_space<vmem>>, vector<8x384xf32>
    %c64_173 = arith.constant 64 : index
    %c0_174 = arith.constant 0 : index
    %134 = vector.load %arg9[%c64_173, %c0_174] : memref<72x384xf32, #tpu.memory_space<vmem>>, vector<8x384xf32>
    tpu.vector_store %arg9[%c64_173, %c0_174], %133 {strides = array<i32>} : memref<72x384xf32, #tpu.memory_space<vmem>>, vector<8x384xf32>,
    %c3 = arith.constant 3 : index
    %c0_175 = arith.constant 0 : index
    %c0_176 = arith.constant 0 : index
    %135 = vector.load %arg2[%c3, %c0_175, %c0_176] : memref<5x8x72xf32, #tpu.memory_space<vmem>>, vector<1x8x72xf32>
    %136 = vector.shape_cast %135 : vector<1x8x72xf32> to vector<8x72xf32>
    %137 = arith.truncf %136 : vector<8x72xf32> to vector<8x72xbf16>
    %c0_177 = arith.constant 0 : index
    %c0_178 = arith.constant 0 : index
    %138 = vector.load %arg9[%c0_177, %c0_178] : memref<72x384xf32, #tpu.memory_space<vmem>>, vector<72x384xf32>
    %139 = arith.truncf %138 : vector<72x384xf32> to vector<72x384xbf16>
    %cst_179 = arith.constant dense<0.000000e+00> : vector<8x384xf32>
    %140 = tpu.matmul %137, %139, %cst_179 {dimension_numbers = #tpu.dot_dimension_numbers<[1], [0], [0], [1], [0, 0, 1, 1], [], []>} : vector<8x72xbf16>, vector<72x384xbf16>, vector<8x384xf32> -> vector<8x384xf32>
    %c3_180 = arith.constant 3 : index
    %c0_181 = arith.constant 0 : index
    %c0_182 = arith.constant 0 : index
    %141 = vector.load %arg3[%c3_180, %c0_181, %c0_182] : memref<5x8x1xf32, #tpu.memory_space<vmem>>, vector<1x8x1xf32>
    %142 = vector.shape_cast %141 : vector<1x8x1xf32> to vector<8x1xf32>
    %143 = vector.broadcast %142 : vector<8x1xf32> to vector<8x384xf32>
    %144 = arith.addf %140, %143 : vector<8x384xf32>
    %cst_183 = arith.constant 0.000000e+00 : f32
    %145 = vector.broadcast %cst_183 : f32 to vector<8x384xf32>
    %146 = arith.maximumf %144, %145 : vector<8x384xf32>
    %cst_184 = arith.constant 0.000000e+00 : f32
    %147 = vector.shape_cast %7 : vector<1x384xi1> to vector<1x384xi1>
    %148 = vector.broadcast %147 : vector<1x384xi1> to vector<8x384xi1>
    %149 = vector.broadcast %cst_184 : f32 to vector<8x384xf32>
    %150 = arith.select %148, %146, %149 : vector<8x384xi1>, vector<8x384xf32>
    %151 = vector.extract_strided_slice %150 {offsets = [0, 0], sizes = [8, 288], strides = [1, 1]} : vector<8x384xf32> to vector<8x288xf32>
    %c0_185 = arith.constant 0 : index
    %c19_186 = arith.constant 19 : index
    %152 = vector.load %arg8[%c0_185, %c19_186] : memref<8x512xf32, #tpu.memory_space<vmem>>, vector<8x288xf32>
    tpu.vector_store %arg8[%c0_185, %c19_186], %151 {strides = array<i32>} : memref<8x512xf32, #tpu.memory_space<vmem>>, vector<8x288xf32>,
    %c0_187 = arith.constant 0 : index
    %c0_188 = arith.constant 0 : index
    %153 = vector.load %arg8[%c0_187, %c0_188] : memref<8x512xf32, #tpu.memory_space<vmem>>, vector<8x384xf32>
    %c0_189 = arith.constant 0 : index
    %c0_190 = arith.constant 0 : index
    %154 = vector.load %arg9[%c0_189, %c0_190] : memref<72x384xf32, #tpu.memory_space<vmem>>, vector<8x384xf32>
    tpu.vector_store %arg9[%c0_189, %c0_190], %153 {strides = array<i32>} : memref<72x384xf32, #tpu.memory_space<vmem>>, vector<8x384xf32>,
    %c0_191 = arith.constant 0 : index
    %c1_192 = arith.constant 1 : index
    %155 = vector.load %arg8[%c0_191, %c1_192] : memref<8x512xf32, #tpu.memory_space<vmem>>, vector<8x384xf32>
    %c8_193 = arith.constant 8 : index
    %c0_194 = arith.constant 0 : index
    %156 = vector.load %arg9[%c8_193, %c0_194] : memref<72x384xf32, #tpu.memory_space<vmem>>, vector<8x384xf32>
    tpu.vector_store %arg9[%c8_193, %c0_194], %155 {strides = array<i32>} : memref<72x384xf32, #tpu.memory_space<vmem>>, vector<8x384xf32>,
    %c0_195 = arith.constant 0 : index
    %c2_196 = arith.constant 2 : index
    %157 = vector.load %arg8[%c0_195, %c2_196] : memref<8x512xf32, #tpu.memory_space<vmem>>, vector<8x384xf32>
    %c16_197 = arith.constant 16 : index
    %c0_198 = arith.constant 0 : index
    %158 = vector.load %arg9[%c16_197, %c0_198] : memref<72x384xf32, #tpu.memory_space<vmem>>, vector<8x384xf32>
    tpu.vector_store %arg9[%c16_197, %c0_198], %157 {strides = array<i32>} : memref<72x384xf32, #tpu.memory_space<vmem>>, vector<8x384xf32>,
    %c0_199 = arith.constant 0 : index
    %c18_200 = arith.constant 18 : index
    %159 = vector.load %arg8[%c0_199, %c18_200] : memref<8x512xf32, #tpu.memory_space<vmem>>, vector<8x384xf32>
    %c24_201 = arith.constant 24 : index
    %c0_202 = arith.constant 0 : index
    %160 = vector.load %arg9[%c24_201, %c0_202] : memref<72x384xf32, #tpu.memory_space<vmem>>, vector<8x384xf32>
    tpu.vector_store %arg9[%c24_201, %c0_202], %159 {strides = array<i32>} : memref<72x384xf32, #tpu.memory_space<vmem>>, vector<8x384xf32>,
    %c0_203 = arith.constant 0 : index
    %c19_204 = arith.constant 19 : index
    %161 = vector.load %arg8[%c0_203, %c19_204] : memref<8x512xf32, #tpu.memory_space<vmem>>, vector<8x384xf32>
    %c32_205 = arith.constant 32 : index
    %c0_206 = arith.constant 0 : index
    %162 = vector.load %arg9[%c32_205, %c0_206] : memref<72x384xf32, #tpu.memory_space<vmem>>, vector<8x384xf32>
    tpu.vector_store %arg9[%c32_205, %c0_206], %161 {strides = array<i32>} : memref<72x384xf32, #tpu.memory_space<vmem>>, vector<8x384xf32>,
    %c0_207 = arith.constant 0 : index
    %c20_208 = arith.constant 20 : index
    %163 = vector.load %arg8[%c0_207, %c20_208] : memref<8x512xf32, #tpu.memory_space<vmem>>, vector<8x384xf32>
    %c40_209 = arith.constant 40 : index
    %c0_210 = arith.constant 0 : index
    %164 = vector.load %arg9[%c40_209, %c0_210] : memref<72x384xf32, #tpu.memory_space<vmem>>, vector<8x384xf32>
    tpu.vector_store %arg9[%c40_209, %c0_210], %163 {strides = array<i32>} : memref<72x384xf32, #tpu.memory_space<vmem>>, vector<8x384xf32>,
    %c0_211 = arith.constant 0 : index
    %c36_212 = arith.constant 36 : index
    %165 = vector.load %arg8[%c0_211, %c36_212] : memref<8x512xf32, #tpu.memory_space<vmem>>, vector<8x384xf32>
    %c48_213 = arith.constant 48 : index
    %c0_214 = arith.constant 0 : index
    %166 = vector.load %arg9[%c48_213, %c0_214] : memref<72x384xf32, #tpu.memory_space<vmem>>, vector<8x384xf32>
    tpu.vector_store %arg9[%c48_213, %c0_214], %165 {strides = array<i32>} : memref<72x384xf32, #tpu.memory_space<vmem>>, vector<8x384xf32>,
    %c0_215 = arith.constant 0 : index
    %c37_216 = arith.constant 37 : index
    %167 = vector.load %arg8[%c0_215, %c37_216] : memref<8x512xf32, #tpu.memory_space<vmem>>, vector<8x384xf32>
    %c56_217 = arith.constant 56 : index
    %c0_218 = arith.constant 0 : index
    %168 = vector.load %arg9[%c56_217, %c0_218] : memref<72x384xf32, #tpu.memory_space<vmem>>, vector<8x384xf32>
    tpu.vector_store %arg9[%c56_217, %c0_218], %167 {strides = array<i32>} : memref<72x384xf32, #tpu.memory_space<vmem>>, vector<8x384xf32>,
    %c0_219 = arith.constant 0 : index
    %c38_220 = arith.constant 38 : index
    %169 = vector.load %arg8[%c0_219, %c38_220] : memref<8x512xf32, #tpu.memory_space<vmem>>, vector<8x384xf32>
    %c64_221 = arith.constant 64 : index
    %c0_222 = arith.constant 0 : index
    %170 = vector.load %arg9[%c64_221, %c0_222] : memref<72x384xf32, #tpu.memory_space<vmem>>, vector<8x384xf32>
    tpu.vector_store %arg9[%c64_221, %c0_222], %169 {strides = array<i32>} : memref<72x384xf32, #tpu.memory_space<vmem>>, vector<8x384xf32>,
    %c4 = arith.constant 4 : index
    %c0_223 = arith.constant 0 : index
    %c0_224 = arith.constant 0 : index
    %171 = vector.load %arg2[%c4, %c0_223, %c0_224] : memref<5x8x72xf32, #tpu.memory_space<vmem>>, vector<1x8x72xf32>
    %172 = vector.shape_cast %171 : vector<1x8x72xf32> to vector<8x72xf32>
    %173 = arith.truncf %172 : vector<8x72xf32> to vector<8x72xbf16>
    %c0_225 = arith.constant 0 : index
    %c0_226 = arith.constant 0 : index
    %174 = vector.load %arg9[%c0_225, %c0_226] : memref<72x384xf32, #tpu.memory_space<vmem>>, vector<72x384xf32>
    %175 = arith.truncf %174 : vector<72x384xf32> to vector<72x384xbf16>
    %cst_227 = arith.constant dense<0.000000e+00> : vector<8x384xf32>
    %176 = tpu.matmul %173, %175, %cst_227 {dimension_numbers = #tpu.dot_dimension_numbers<[1], [0], [0], [1], [0, 0, 1, 1], [], []>} : vector<8x72xbf16>, vector<72x384xbf16>, vector<8x384xf32> -> vector<8x384xf32>
    %c4_228 = arith.constant 4 : index
    %c0_229 = arith.constant 0 : index
    %c0_230 = arith.constant 0 : index
    %177 = vector.load %arg3[%c4_228, %c0_229, %c0_230] : memref<5x8x1xf32, #tpu.memory_space<vmem>>, vector<1x8x1xf32>
    %178 = vector.shape_cast %177 : vector<1x8x1xf32> to vector<8x1xf32>
    %179 = vector.broadcast %178 : vector<8x1xf32> to vector<8x384xf32>
    %180 = arith.addf %176, %179 : vector<8x384xf32>
    %181 = arith.addf %180, %114 : vector<8x384xf32>
    %cst_231 = arith.constant 0.000000e+00 : f32
    %182 = vector.broadcast %cst_231 : f32 to vector<8x384xf32>
    %183 = arith.maximumf %181, %182 : vector<8x384xf32>
    %cst_232 = arith.constant 0.000000e+00 : f32
    %184 = vector.shape_cast %7 : vector<1x384xi1> to vector<1x384xi1>
    %185 = vector.broadcast %184 : vector<1x384xi1> to vector<8x384xi1>
    %186 = vector.broadcast %cst_232 : f32 to vector<8x384xf32>
    %187 = arith.select %185, %183, %186 : vector<8x384xi1>, vector<8x384xf32>
    %cst_233 = arith.constant dense<0.000000e+00> : vector<8xf32>
    %188 = vector.multi_reduction <add>, %187, %cst_233 [1] : vector<8x384xf32> to vector<8xf32>
    %189 = vector.shape_cast %188 : vector<8xf32> to vector<8x1xf32>
    %c0_234 = arith.constant 0 : index
    %c0_235 = arith.constant 0 : index
    %190 = vector.load %arg4[%c0_234, %c0_235] : memref<8x128xf32, #tpu.memory_space<vmem>>, vector<8x128xf32>
    %191 = vector.broadcast %189 : vector<8x1xf32> to vector<8x128xf32>
    %192 = arith.mulf %191, %190 : vector<8x128xf32>
    %cst_236 = arith.constant dense<0.000000e+00> : vector<128xf32>
    %193 = vector.multi_reduction <add>, %192, %cst_236 [0] : vector<8x128xf32> to vector<128xf32>
    %194 = vector.shape_cast %193 : vector<128xf32> to vector<1x128xf32>
    %c0_237 = arith.constant 0 : index
    %c0_238 = arith.constant 0 : index
    %195 = vector.load %arg5[%c0_237, %c0_238] : memref<1x128xf32, #tpu.memory_space<vmem>>, vector<1x128xf32>
    %196 = arith.addf %194, %195 : vector<1x128xf32>
    %c0_239 = arith.constant 0 : index
    %c0_240 = arith.constant 0 : index
    %c0_241 = arith.constant 0 : index
    %197 = vector.load %arg7[%c0_239, %c0_240, %c0_241] : memref<1x1x128xf32, #tpu.memory_space<vmem>>, vector<1x1x128xf32>
    %198 = vector.shape_cast %197 : vector<1x1x128xf32> to vector<1x128xf32>
    %199 = vector.shape_cast %196 : vector<1x128xf32> to vector<1x1x128xf32>
    tpu.vector_store %arg7[%c0_239, %c0_240, %c0_241], %199 {strides = array<i32>} : memref<1x1x128xf32, #tpu.memory_space<vmem>>, vector<1x1x128xf32>,
    return
  }
  func.func @transform_0(%arg0: i32) -> (i32, i32, i32) {
    %c0_i32 = arith.constant 0 : i32
    %c0_i32_0 = arith.constant 0 : i32
    %c0_i32_1 = arith.constant 0 : i32
    return %arg0, %c0_i32, %c0_i32_0 : i32, i32, i32
  }
  func.func @transform_1(%arg0: i32) -> (i32, i32, i32) {
    %c0_i32 = arith.constant 0 : i32
    %c0_i32_0 = arith.constant 0 : i32
    %c0_i32_1 = arith.constant 0 : i32
    %c0_i32_2 = arith.constant 0 : i32
    return %c0_i32, %c0_i32_0, %c0_i32_1 : i32, i32, i32
  }
  func.func @transform_2(%arg0: i32) -> (i32, i32, i32) {
    %c0_i32 = arith.constant 0 : i32
    %c0_i32_0 = arith.constant 0 : i32
    %c0_i32_1 = arith.constant 0 : i32
    %c0_i32_2 = arith.constant 0 : i32
    return %c0_i32, %c0_i32_0, %c0_i32_1 : i32, i32, i32
  }
  func.func @transform_3(%arg0: i32) -> (i32, i32) {
    %c0_i32 = arith.constant 0 : i32
    %c0_i32_0 = arith.constant 0 : i32
    %c0_i32_1 = arith.constant 0 : i32
    return %c0_i32, %c0_i32_0 : i32, i32
  }
  func.func @transform_4(%arg0: i32) -> (i32, i32) {
    %c0_i32 = arith.constant 0 : i32
    %c0_i32_0 = arith.constant 0 : i32
    %c0_i32_1 = arith.constant 0 : i32
    return %c0_i32, %c0_i32_0 : i32, i32
  }
  func.func @transform_5(%arg0: i32) -> (i32, i32) {
    %c0_i32 = arith.constant 0 : i32
    %c0_i32_0 = arith.constant 0 : i32
    %c0_i32_1 = arith.constant 0 : i32
    return %c0_i32, %c0_i32_0 : i32, i32
  }
  func.func @transform_6(%arg0: i32) -> (i32, i32, i32) {
    %c0_i32 = arith.constant 0 : i32
    %c0_i32_0 = arith.constant 0 : i32
    %c0_i32_1 = arith.constant 0 : i32
    return %arg0, %c0_i32, %c0_i32_0 : i32, i32, i32
  }
}

</mosaic_0001>

<llo_original>
// kernel: resnet_cam_forward.1
$region0: #{resnet_cam_forward.1}
  #allocation0 [shape = 'u32[]', space=smem, size = 0x4, offset = 0x4, fixed_abs, tag = 'smem constant byte address 0x4 - core index']
  #allocation1 [shape = 'u32[144,128]{1,0:T(1,128)}', space=vmem, size = 0x12000, scoped, tag = 'internal scratch']
  #allocation2 [shape = 'f32[8,512]{1,0:T(8,128)}', space=vmem, size = 0x4000, scoped, tag = 'scratch operand']
  #allocation3 [shape = 'f32[72,384]{1,0:T(8,128)}', space=vmem, size = 0x1b000, scoped, tag = 'scratch operand']
  %s0 = inlined_call_operand.vmem [shape: f32[2,8,384], index: 0, kind: input, shape index: {}]
  %s1 = inlined_call_operand.vmem [shape: f32[5,8,72], index: 1, kind: input, shape index: {}]
  %s2 = inlined_call_operand.vmem [shape: f32[5,8,1], index: 2, kind: input, shape index: {}]
  %s3 = inlined_call_operand.vmem [shape: f32[8,128], index: 3, kind: input, shape index: {}]
  %s4 = inlined_call_operand.vmem [shape: f32[1,128], index: 4, kind: input, shape index: {}]
  %s5 = inlined_call_operand.vmem [shape: f32[1,384], index: 5, kind: input, shape index: {}]
  %s6 = inlined_call_operand.hbm [shape: f32[2,1,128], index: 6, kind: output, shape index: {}]
  %s7 = sld [smem:[#allocation0]]
  $region57: #{resnet_cam_forward.1} parent=0
    _
  %s9 = ssub.s32 1, %s7
  %s10 = scalar_select 0, %s9, %s7
  $region1: #{resnet_cam_forward.1} parent=0
    #allocation4 [shape = 'u8[1024]{0}', space=vmem, size = 0x400, scoped, tag = 'output window, operand 0']
    #allocation5 [shape = 's32[2]{0}', space=sflag, size = 0x8, scoped, tag = 'scoped memory for resnet_cam_forward.1']
    %11 = vsyncpa [#allocation5], 0
    %s12 = scalar_lea.sflag [#allocation5], 1
    %13 = vsyncpa %s12, 0
    loop: start=0, step=1, limit=4
    $region2: #{resnet_cam_forward.1} parent=1 // loop_pre_header
      _
    $region3: #{resnet_cam_forward.1} parent=1 // loop_header
      %s15 = sphi 0, %s19
      %p16 = scmp.ge.s32.totalorder %s15, 4
      %s25 = sphi 0, %s27
      %s28 = sphi 0, %s25
      %s29 = sphi 0, %s28
      %s45 = sphi 0, %s29
      %s49 = sphi 0, %s49
      %s51 = sphi 0, %s49
      %s52 = sphi 0, %s51
      %s66 = sphi 0, %s52
      %s70 = sphi 0, %s70
      %s72 = sphi 0, %s70
      %s73 = sphi 0, %s72
      %s87 = sphi 0, %s73
      %s91 = sphi 0, %s91
      %s93 = sphi 0, %s91
      %s94 = sphi 0, %s93
      %s108 = sphi 0, %s94
      %s112 = sphi 0, %s112
      %s114 = sphi 0, %s112
      %s115 = sphi 0, %s114
      %s129 = sphi 0, %s115
      %s133 = sphi 0, %s133
      %s135 = sphi 0, %s133
      %s136 = sphi 0, %s135
      %s150 = sphi 0, %s136
      %s156 = sphi 0, %s158
      %s159 = sphi 0, %s156
      %s160 = sphi 0, %s159
      %s176 = sphi 0, %s160
    $region4: #{resnet_cam_forward.1} parent=1 // loop_header_branch
      %18 = sbr.rel (%p16) target = $region8
    $region5: #{resnet_cam_forward.1} parent=1 // loop_body
      %s20 = ssub.s32 %s15, 1
      %s21 = ssub.s32 %s15, 2
      %s22 = sadd.s32 %s15, 1
      %s23 = ssub.s32 %s15, %s22
      %p24 = scmp.eq.s32.totalorder %s23, 0
      %s26 = sadd.s32 %s25, 1
      %s27 = scalar_select %p24, %s25, %s26
      %p30 = pneg %p24
      %p31 = scmp.eq.s32.totalorder %s15, 1
      %p32 = por %p30, %p31
      %p33 = scmp.ne.s32.totalorder %s25, %s28
      %p34 = scmp.eq.s32.totalorder %s15, 0
      %p35 = por %p33, %p34
      %p36 = scmp.ne.s32.totalorder %s25, %s28
      %p37 = scmp.eq.s32.totalorder %s20, 1
      %p38 = por %p36, %p37
      %p39 = scmp.ne.s32.totalorder %s28, %s29
      %p40 = scmp.eq.s32.totalorder %s20, 0
      %p41 = por %p39, %p40
      %p42 = scmp.ne.s32.totalorder %s28, %s29
      %p43 = scmp.eq.s32.totalorder %s21, 1
      %p44 = por %p42, %p43
      %p46 = scmp.ne.s32.totalorder %s29, %s45
      %p47 = scmp.eq.s32.totalorder %s21, 0
      %p48 = por %p46, %p47
      %s50 = sadd.s32 %s49, 1
      %p53 = scmp.eq.s32.totalorder %s15, 1
      %p54 = scmp.ne.s32.totalorder %s49, %s51
      %p55 = scmp.eq.s32.totalorder %s15, 0
      %p56 = por %p54, %p55
      %p57 = scmp.ne.s32.totalorder %s49, %s51
      %p58 = scmp.eq.s32.totalorder %s20, 1
      %p59 = por %p57, %p58
      %p60 = scmp.ne.s32.totalorder %s51, %s52
      %p61 = scmp.eq.s32.totalorder %s20, 0
      %p62 = por %p60, %p61
      %p63 = scmp.ne.s32.totalorder %s51, %s52
      %p64 = scmp.eq.s32.totalorder %s21, 1
      %p65 = por %p63, %p64
      %p67 = scmp.ne.s32.totalorder %s52, %s66
      %p68 = scmp.eq.s32.totalorder %s21, 0
      %p69 = por %p67, %p68
      %s71 = sadd.s32 %s70, 1
      %p74 = scmp.eq.s32.totalorder %s15, 1
      %p75 = scmp.ne.s32.totalorder %s70, %s72
      %p76 = scmp.eq.s32.totalorder %s15, 0
      %p77 = por %p75, %p76
      %p78 = scmp.ne.s32.totalorder %s70, %s72
      %p79 = scmp.eq.s32.totalorder %s20, 1
      %p80 = por %p78, %p79
      %p81 = scmp.ne.s32.totalorder %s72, %s73
      %p82 = scmp.eq.s32.totalorder %s20, 0
      %p83 = por %p81, %p82
      %p84 = scmp.ne.s32.totalorder %s72, %s73
      %p85 = scmp.eq.s32.totalorder %s21, 1
      %p86 = por %p84, %p85
      %p88 = scmp.ne.s32.totalorder %s73, %s87
      %p89 = scmp.eq.s32.totalorder %s21, 0
      %p90 = por %p88, %p89
      %s92 = sadd.s32 %s91, 1
      %p95 = scmp.eq.s32.totalorder %s15, 1
      %p96 = scmp.ne.s32.totalorder %s91, %s93
      %p97 = scmp.eq.s32.totalorder %s15, 0
      %p98 = por %p96, %p97
      %p99 = scmp.ne.s32.totalorder %s91, %s93
      %p100 = scmp.eq.s32.totalorder %s20, 1
      %p101 = por %p99, %p100
      %p102 = scmp.ne.s32.totalorder %s93, %s94
      %p103 = scmp.eq.s32.totalorder %s20, 0
      %p104 = por %p102, %p103
      %p105 = scmp.ne.s32.totalorder %s93, %s94
      %p106 = scmp.eq.s32.totalorder %s21, 1
      %p107 = por %p105, %p106
      %p109 = scmp.ne.s32.totalorder %s94, %s108
      %p110 = scmp.eq.s32.totalorder %s21, 0
      %p111 = por %p109, %p110
      %s113 = sadd.s32 %s112, 1
      %p116 = scmp.eq.s32.totalorder %s15, 1
      %p117 = scmp.ne.s32.totalorder %s112, %s114
      %p118 = scmp.eq.s32.totalorder %s15, 0
      %p119 = por %p117, %p118
      %p120 = scmp.ne.s32.totalorder %s112, %s114
      %p121 = scmp.eq.s32.totalorder %s20, 1
      %p122 = por %p120, %p121
      %p123 = scmp.ne.s32.totalorder %s114, %s115
      %p124 = scmp.eq.s32.totalorder %s20, 0
      %p125 = por %p123, %p124
      %p126 = scmp.ne.s32.totalorder %s114, %s115
      %p127 = scmp.eq.s32.totalorder %s21, 1
      %p128 = por %p126, %p127
      %p130 = scmp.ne.s32.totalorder %s115, %s129
      %p131 = scmp.eq.s32.totalorder %s21, 0
      %p132 = por %p130, %p131
      %s134 = sadd.s32 %s133, 1
      %p137 = scmp.eq.s32.totalorder %s15, 1
      %p138 = scmp.ne.s32.totalorder %s133, %s135
      %p139 = scmp.eq.s32.totalorder %s15, 0
      %p140 = por %p138, %p139
      %p141 = scmp.ne.s32.totalorder %s133, %s135
      %p142 = scmp.eq.s32.totalorder %s20, 1
      %p143 = por %p141, %p142
      %p144 = scmp.ne.s32.totalorder %s135, %s136
      %p145 = scmp.eq.s32.totalorder %s20, 0
      %p146 = por %p144, %p145
      %p147 = scmp.ne.s32.totalorder %s135, %s136
      %p148 = scmp.eq.s32.totalorder %s21, 1
      %p149 = por %p147, %p148
      %p151 = scmp.ne.s32.totalorder %s136, %s150
      %p152 = scmp.eq.s32.totalorder %s21, 0
      %p153 = por %p151, %p152
      %s154 = ssub.s32 %s15, %s22
      %p155 = scmp.eq.s32.totalorder %s154, 0
      %s157 = sadd.s32 %s156, 1
      %s158 = scalar_select %p155, %s156, %s157
      %p161 = pneg %p155
      %p162 = scmp.eq.s32.totalorder %s15, 1
      %p163 = por %p161, %p162
      %p164 = scmp.ne.s32.totalorder %s156, %s159
      %p165 = scmp.eq.s32.totalorder %s15, 0
      %p166 = por %p164, %p165
      %p167 = scmp.ne.s32.totalorder %s156, %s159
      %p168 = scmp.eq.s32.totalorder %s20, 1
      %p169 = por %p167, %p168
      %p170 = scmp.ne.s32.totalorder %s159, %s160
      %p171 = scmp.eq.s32.totalorder %s20, 0
      %p172 = por %p170, %p171
      %p173 = scmp.ne.s32.totalorder %s159, %s160
      %p174 = scmp.eq.s32.totalorder %s21, 1
      %p175 = por %p173, %p174
      %p177 = scmp.ne.s32.totalorder %s160, %s176
      %p178 = scmp.eq.s32.totalorder %s21, 0
      %p179 = por %p177, %p178
      %p180 = scmp.le.s32.totalorder 1, %s15
      %p181 = scmp.lt.s32.totalorder %s15, 3
      %p182 = pnand %p180, %p181
      %p183 = pneg %p182
      // Predicated region
      $region9: #{resnet_cam_forward.1} parent=5 // pred_check
        _
      $region10: #{resnet_cam_forward.1} parent=5 // pred_check_branch
        %185 = sbr.rel (%p182) target = $region12
      $region11: #{resnet_cam_forward.1} parent=5 // pred_region
        %s186 = ssub.s32 %s15, 1
        // Predicated region
        $region13: #{resnet_cam_forward.1} parent=11 // pred_check
          %p187 = pneg %p62
        $region14: #{resnet_cam_forward.1} parent=11 // pred_check_branch
          %189 = sbr.rel (%p187) target = $region16
        $region15: #{resnet_cam_forward.1} parent=11 // pred_region
          _
        $region16: #{resnet_cam_forward.1} parent=11 // pred_fallthru
          _
        // Predicated region
        $region17: #{resnet_cam_forward.1} parent=11 // pred_check
          %p190 = pneg %p83
        $region18: #{resnet_cam_forward.1} parent=11 // pred_check_branch
          %192 = sbr.rel (%p190) target = $region20
        $region19: #{resnet_cam_forward.1} parent=11 // pred_region
          _
        $region20: #{resnet_cam_forward.1} parent=11 // pred_fallthru
          _
        // Predicated region
        $region21: #{resnet_cam_forward.1} parent=11 // pred_check
          %p193 = pneg %p104
        $region22: #{resnet_cam_forward.1} parent=11 // pred_check_branch
          %195 = sbr.rel (%p193) target = $region24
        $region23: #{resnet_cam_forward.1} parent=11 // pred_region
          _
        $region24: #{resnet_cam_forward.1} parent=11 // pred_fallthru
          _
        // Predicated region
        $region25: #{resnet_cam_forward.1} parent=11 // pred_check
          %p196 = pneg %p125
        $region26: #{resnet_cam_forward.1} parent=11 // pred_check_branch
          %198 = sbr.rel (%p196) target = $region28
        $region27: #{resnet_cam_forward.1} parent=11 // pred_region
          _
        $region28: #{resnet_cam_forward.1} parent=11 // pred_fallthru
          _
        // Predicated region
        $region29: #{resnet_cam_forward.1} parent=11 // pred_check
          %p199 = pneg %p146
        $region30: #{resnet_cam_forward.1} parent=11 // pred_check_branch
          %201 = sbr.rel (%p199) target = $region32
        $region31: #{resnet_cam_forward.1} parent=11 // pred_region
          _
        $region32: #{resnet_cam_forward.1} parent=11 // pred_fallthru
          _
      $region12: #{resnet_cam_forward.1} parent=5 // pred_fallthru
        _
      %p202 = scmp.lt.s32.totalorder %s15, 2
      // Predicated region
      $region33: #{resnet_cam_forward.1} parent=5 // pred_check
        %p203 = pneg %p202
      $region34: #{resnet_cam_forward.1} parent=5 // pred_check_branch
        %205 = sbr.rel (%p203) target = $region36
      $region35: #{resnet_cam_forward.1} parent=5 // pred_region
        // Predicated region
        $region37: #{resnet_cam_forward.1} parent=35 // pred_check
          %p206 = pneg %p35
        $region38: #{resnet_cam_forward.1} parent=35 // pred_check_branch
          %208 = sbr.rel (%p206) target = $region40
        $region39: #{resnet_cam_forward.1} parent=35 // pred_region
          %p209 = scmp.lt.s32.totalorder %s15, 1
          %s210 = scalar_select %p209, %s15, 1
          %s211 = smul.addr %s210, 3
          %s212 = smul.addr %s211, 8
          %s213 = scalar_lea.vmem %s0, %s212
        $region40: #{resnet_cam_forward.1} parent=35 // pred_fallthru
          _
      $region36: #{resnet_cam_forward.1} parent=5 // pred_fallthru
        _
      %p214 = scmp.le.s32.totalorder 1, %s15
      %p215 = scmp.lt.s32.totalorder %s15, 3
      %p216 = pnand %p214, %p215
      %p217 = pneg %p216
      // Predicated region
      $region41: #{resnet_cam_forward.1} parent=5 // pred_check
        _
      $region42: #{resnet_cam_forward.1} parent=5 // pred_check_branch
        %219 = sbr.rel (%p216) target = $region44
      $region43: #{resnet_cam_forward.1} parent=5 // pred_region
        %s220 = ssub.s32 %s15, 1
        %p221 = scmp.lt.s32.totalorder %s20, 1
        %s222 = scalar_select %p221, %s20, 1
        %s223 = smul.addr %s222, 3
        %s224 = smul.addr %s223, 8
        %s225 = scalar_lea.vmem %s0, %s224
        %p226 = pneg %p41
        %p227 = pneg %p38
        %p228 = pneg %p62
        %p229 = pneg %p59
        %p230 = pneg %p83
        %p231 = pneg %p80
        %p232 = pneg %p104
        %p233 = pneg %p101
        %p234 = pneg %p125
        %p235 = pneg %p122
        %p236 = pneg %p146
        %p237 = pneg %p143
        %p238 = pneg %p172
        %p239 = pneg %p169
        %s240 = sand.u32 %s159, 1
        %s241 = scalar_lea.sflag [#allocation5], %s240
        %s242 = sand.u32 %s159, 1
        %s243 = scalar_lea.vmem [#allocation4], %s242
        %p244 = scmp.lt.s32.totalorder %s20, 1
        %s245 = scalar_select %p244, %s20, 1
        %s246 = smul.addr %s245, 3
        %s247 = smul.addr %s246, 8
        %s248 = scalar_lea.vmem %s0, %s247
        %v250 = vld [vmem:[%s248] sm:$0xff]
        %v251 = vld [vmem:[%s248 + $0x8] sm:$0xff]
        %v252 = vld [vmem:[%s248 + $0x10] sm:$0xff]
        %253 = vst [vmem:[#allocation2] sm:$0xff] %v250
        %254 = vst [vmem:[#allocation2 + $0x8] sm:$0xff] %v251
        %255 = vst [vmem:[#allocation2 + $0x10] sm:$0xff] %v252
        %256 = vst [vmem:[#allocation2 + $0x18] sm:$0xff] 0.0
        %v257 = vld [vmem:[%s5] sm:$0x7]
        %vm258 = vcmp.ne.f32.partialorder %v257, 0.0
        %v259 = vld [vmem:[#allocation2] sm:$0xff]
        %v260 = vld [vmem:[#allocation2 + $0x8] sm:$0xff]
        %v261 = vld [vmem:[#allocation2 + $0x10] sm:$0xff]
        %262 = vst [vmem:[#allocation3] sm:$0xff] %v259
        %263 = vst [vmem:[#allocation3 + $0x8] sm:$0xff] %v260
        %264 = vst [vmem:[#allocation3 + $0x10] sm:$0xff] %v261
        %v265 = vld [vmem:[#allocation2] sm:$0xff]
        %v266 = vld [vmem:[#allocation2 + $0x8] sm:$0xff]
        %v267 = vld [vmem:[#allocation2 + $0x10] sm:$0xff]
        %v268 = vld [vmem:[#allocation2 + $0x18] sm:$0xff]
        %273 = vrot.lane.b32.xlu0 %v265, 127
        %v274 = vpop.permute.xlu0 %273
        %275 = vrot.lane.b32.xlu0 %v266, 127
        %v276 = vpop.permute.xlu0 %275
        %277 = vrot.lane.b32.xlu0 %v267, 127
        %v278 = vpop.permute.xlu0 %277
        %279 = vrot.lane.b32.xlu0 %v268, 127
        %v280 = vpop.permute.xlu0 %279
        %vm281 = vcmask 1039360
        %v282 = vsel %vm281, %v274, %v276
        %v283 = vsel %vm281, %v276, %v278
        %v284 = vsel %vm281, %v278, %v280
        %288 = vst [vmem:[#allocation3 + $0x18] sm:$0xff] %v282
        %289 = vst [vmem:[#allocation3 + $0x20] sm:$0xff] %v283
        %290 = vst [vmem:[#allocation3 + $0x28] sm:$0xff] %v284
        %v291 = vld [vmem:[#allocation2] sm:$0xff]
        %v292 = vld [vmem:[#allocation2 + $0x8] sm:$0xff]
        %v293 = vld [vmem:[#allocation2 + $0x10] sm:$0xff]
        %v294 = vld [vmem:[#allocation2 + $0x18] sm:$0xff]
        %299 = vrot.lane.b32.xlu0 %v291, 126
        %v300 = vpop.permute.xlu0 %299
        %301 = vrot.lane.b32.xlu0 %v292, 126
        %v302 = vpop.permute.xlu0 %301
        %303 = vrot.lane.b32.xlu0 %v293, 126
        %v304 = vpop.permute.xlu0 %303
        %305 = vrot.lane.b32.xlu0 %v294, 126
        %v306 = vpop.permute.xlu0 %305
        %vm307 = vcmask 1031168
        %v308 = vsel %vm307, %v300, %v302
        %v309 = vsel %vm307, %v302, %v304
        %v310 = vsel %vm307, %v304, %v306
        %314 = vst [vmem:[#allocation3 + $0x30] sm:$0xff] %v308
        %315 = vst [vmem:[#allocation3 + $0x38] sm:$0xff] %v309
        %316 = vst [vmem:[#allocation3 + $0x40] sm:$0xff] %v310
        %v317 = vld [vmem:[#allocation2] sm:$0xff]
        %v318 = vld [vmem:[#allocation2 + $0x8] sm:$0xff]
        %v319 = vld [vmem:[#allocation2 + $0x10] sm:$0xff]
        %v320 = vld [vmem:[#allocation2 + $0x18] sm:$0xff]
        %325 = vrot.lane.b32.xlu0 %v317, 110
        %v326 = vpop.permute.xlu0 %325
        %327 = vrot.lane.b32.xlu0 %v318, 110
        %v328 = vpop.permute.xlu0 %327
        %329 = vrot.lane.b32.xlu0 %v319, 110
        %v330 = vpop.permute.xlu0 %329
        %331 = vrot.lane.b32.xlu0 %v320, 110
        %v332 = vpop.permute.xlu0 %331
        %vm333 = vcmask 900096
        %v334 = vsel %vm333, %v326, %v328
        %v335 = vsel %vm333, %v328, %v330
        %v336 = vsel %vm333, %v330, %v332
        %340 = vst [vmem:[#allocation3 + $0x48] sm:$0xff] %v334
        %341 = vst [vmem:[#allocation3 + $0x50] sm:$0xff] %v335
        %342 = vst [vmem:[#allocation3 + $0x58] sm:$0xff] %v336
        %v343 = vld [vmem:[#allocation2] sm:$0xff]
        %v344 = vld [vmem:[#allocation2 + $0x8] sm:$0xff]
        %v345 = vld [vmem:[#allocation2 + $0x10] sm:$0xff]
        %v346 = vld [vmem:[#allocation2 + $0x18] sm:$0xff]
        %351 = vrot.lane.b32.xlu0 %v343, 109
        %v352 = vpop.permute.xlu0 %351
        %353 = vrot.lane.b32.xlu0 %v344, 109
        %v354 = vpop.permute.xlu0 %353
        %355 = vrot.lane.b32.xlu0 %v345, 109
        %v356 = vpop.permute.xlu0 %355
        %357 = vrot.lane.b32.xlu0 %v346, 109
        %v358 = vpop.permute.xlu0 %357
        %vm359 = vcmask 891904
        %v360 = vsel %vm359, %v352, %v354
        %v361 = vsel %vm359, %v354, %v356
        %v362 = vsel %vm359, %v356, %v358
        %366 = vst [vmem:[#allocation3 + $0x60] sm:$0xff] %v360
        %367 = vst [vmem:[#allocation3 + $0x68] sm:$0xff] %v361
        %368 = vst [vmem:[#allocation3 + $0x70] sm:$0xff] %v362
        %v369 = vld [vmem:[#allocation2] sm:$0xff]
        %v370 = vld [vmem:[#allocation2 + $0x8] sm:$0xff]
        %v371 = vld [vmem:[#allocation2 + $0x10] sm:$0xff]
        %v372 = vld [vmem:[#allocation2 + $0x18] sm:$0xff]
        %377 = vrot.lane.b32.xlu0 %v369, 108
        %v378 = vpop.permute.xlu0 %377
        %379 = vrot.lane.b32.xlu0 %v370, 108
        %v380 = vpop.permute.xlu0 %379
        %381 = vrot.lane.b32.xlu0 %v371, 108
        %v382 = vpop.permute.xlu0 %381
        %383 = vrot.lane.b32.xlu0 %v372, 108
        %v384 = vpop.permute.xlu0 %383
        %vm385 = vcmask 883712
        %v386 = vsel %vm385, %v378, %v380
        %v387 = vsel %vm385, %v380, %v382
        %v388 = vsel %vm385, %v382, %v384
        %392 = vst [vmem:[#allocation3 + $0x78] sm:$0xff] %v386
        %393 = vst [vmem:[#allocation3 + $0x80] sm:$0xff] %v387
        %394 = vst [vmem:[#allocation3 + $0x88] sm:$0xff] %v388
        %v395 = vld [vmem:[#allocation2] sm:$0xff]
        %v396 = vld [vmem:[#allocation2 + $0x8] sm:$0xff]
        %v397 = vld [vmem:[#allocation2 + $0x10] sm:$0xff]
        %v398 = vld [vmem:[#allocation2 + $0x18] sm:$0xff]
        %403 = vrot.lane.b32.xlu0 %v395, 92
        %v404 = vpop.permute.xlu0 %403
        %405 = vrot.lane.b32.xlu0 %v396, 92
        %v406 = vpop.permute.xlu0 %405
        %407 = vrot.lane.b32.xlu0 %v397, 92
        %v408 = vpop.permute.xlu0 %407
        %409 = vrot.lane.b32.xlu0 %v398, 92
        %v410 = vpop.permute.xlu0 %409
        %vm411 = vcmask 752640
        %v412 = vsel %vm411, %v404, %v406
        %v413 = vsel %vm411, %v406, %v408
        %v414 = vsel %vm411, %v408, %v410
        %418 = vst [vmem:[#allocation3 + $0x90] sm:$0xff] %v412
        %419 = vst [vmem:[#allocation3 + $0x98] sm:$0xff] %v413
        %420 = vst [vmem:[#allocation3 + $0xa0] sm:$0xff] %v414
        %v421 = vld [vmem:[#allocation2] sm:$0xff]
        %v422 = vld [vmem:[#allocation2 + $0x8] sm:$0xff]
        %v423 = vld [vmem:[#allocation2 + $0x10] sm:$0xff]
        %v424 = vld [vmem:[#allocation2 + $0x18] sm:$0xff]
        %429 = vrot.lane.b32.xlu0 %v421, 91
        %v430 = vpop.permute.xlu0 %429
        %431 = vrot.lane.b32.xlu0 %v422, 91
        %v432 = vpop.permute.xlu0 %431
        %433 = vrot.lane.b32.xlu0 %v423, 91
        %v434 = vpop.permute.xlu0 %433
        %435 = vrot.lane.b32.xlu0 %v424, 91
        %v436 = vpop.permute.xlu0 %435
        %vm437 = vcmask 744448
        %v438 = vsel %vm437, %v430, %v432
        %v439 = vsel %vm437, %v432, %v434
        %v440 = vsel %vm437, %v434, %v436
        %444 = vst [vmem:[#allocation3 + $0xa8] sm:$0xff] %v438
        %445 = vst [vmem:[#allocation3 + $0xb0] sm:$0xff] %v439
        %446 = vst [vmem:[#allocation3 + $0xb8] sm:$0xff] %v440
        %v447 = vld [vmem:[#allocation2] sm:$0xff]
        %v448 = vld [vmem:[#allocation2 + $0x8] sm:$0xff]
        %v449 = vld [vmem:[#allocation2 + $0x10] sm:$0xff]
        %v450 = vld [vmem:[#allocation2 + $0x18] sm:$0xff]
        %455 = vrot.lane.b32.xlu0 %v447, 90
        %v456 = vpop.permute.xlu0 %455
        %457 = vrot.lane.b32.xlu0 %v448, 90
        %v458 = vpop.permute.xlu0 %457
        %459 = vrot.lane.b32.xlu0 %v449, 90
        %v460 = vpop.permute.xlu0 %459
        %461 = vrot.lane.b32.xlu0 %v450, 90
        %v462 = vpop.permute.xlu0 %461
        %vm463 = vcmask 736256
        %v464 = vsel %vm463, %v456, %v458
        %v465 = vsel %vm463, %v458, %v460
        %v466 = vsel %vm463, %v460, %v462
        %470 = vst [vmem:[#allocation3 + $0xc0] sm:$0xff] %v464
        %471 = vst [vmem:[#allocation3 + $0xc8] sm:$0xff] %v465
        %472 = vst [vmem:[#allocation3 + $0xd0] sm:$0xff] %v466
        %v473 = vld [vmem:[%s1] sm:$0xff]
        %v474 = vpack.c.bf16 %v473, %v473
        %v475 = vld [vmem:[#allocation3] sm:$0xff]
        %v476 = vld [vmem:[#allocation3 + $0x8] sm:$0xff]
        %v477 = vld [vmem:[#allocation3 + $0x10] sm:$0xff]
        %v478 = vld [vmem:[#allocation3 + $0x18] sm:$0xff]
        %v479 = vld [vmem:[#allocation3 + $0x20] sm:$0xff]
        %v480 = vld [vmem:[#allocation3 + $0x28] sm:$0xff]
        %v481 = vld [vmem:[#allocation3 + $0x30] sm:$0xff]
        %v482 = vld [vmem:[#allocation3 + $0x38] sm:$0xff]
        %v483 = vld [vmem:[#allocation3 + $0x40] sm:$0xff]
        %v484 = vld [vmem:[#allocation3 + $0x48] sm:$0xff]
        %v485 = vld [vmem:[#allocation3 + $0x50] sm:$0xff]
        %v486 = vld [vmem:[#allocation3 + $0x58] sm:$0xff]
        %v487 = vld [vmem:[#allocation3 + $0x60] sm:$0xff]
        %v488 = vld [vmem:[#allocation3 + $0x68] sm:$0xff]
        %v489 = vld [vmem:[#allocation3 + $0x70] sm:$0xff]
        %v490 = vld [vmem:[#allocation3 + $0x78] sm:$0xff]
        %v491 = vld [vmem:[#allocation3 + $0x80] sm:$0xff]
        %v492 = vld [vmem:[#allocation3 + $0x88] sm:$0xff]
        %v493 = vld [vmem:[#allocation3 + $0x90] sm:$0xff]
        %v494 = vld [vmem:[#allocation3 + $0x98] sm:$0xff]
        %v495 = vld [vmem:[#allocation3 + $0xa0] sm:$0xff]
        %v496 = vld [vmem:[#allocation3 + $0xa8] sm:$0xff]
        %v497 = vld [vmem:[#allocation3 + $0xb0] sm:$0xff]
        %v498 = vld [vmem:[#allocation3 + $0xb8] sm:$0xff]
        %v499 = vld [vmem:[#allocation3 + $0xc0] sm:$0xff]
        %v500 = vld [vmem:[#allocation3 + $0xc8] sm:$0xff]
        %v501 = vld [vmem:[#allocation3 + $0xd0] sm:$0xff]
        %v502 = vpack.c.bf16 %v478, %v475
        %v503 = vpack.c.bf16 %v479, %v476
        %v504 = vpack.c.bf16 %v480, %v477
        %v505 = vpack.c.bf16 %v484, %v481
        %v506 = vpack.c.bf16 %v485, %v482
        %v507 = vpack.c.bf16 %v486, %v483
        %v508 = vpack.c.bf16 %v490, %v487
        %v509 = vpack.c.bf16 %v491, %v488
        %v510 = vpack.c.bf16 %v492, %v489
        %v511 = vpack.c.bf16 %v496, %v493
        %v512 = vpack.c.bf16 %v497, %v494
        %v513 = vpack.c.bf16 %v498, %v495
        %v514 = vpack.c.bf16 %v499, %v499
        %v515 = vpack.c.bf16 %v500, %v500
        %v516 = vpack.c.bf16 %v501, %v501
        %v517 = vld [vmem:[%s2] sm:$0xff]
        %519 = vset.pattern.permute.xlu0 0
        %520 = vperm.xlu0 %519, %v517
        %v521 = vpop.permute.xlu0 %520
        %vm523 = vcmask 588800
        %v525 = vsel %vm523, %v474, 0
        %vm527 = vcmask 1043456
        %v529 = vsel %vm527, %v514, 0
        %v532 = vsel %vm527, %v515, 0
        %v535 = vsel %vm527, %v516, 0
        %537 = vmatprep.subr.bf16.mxu0 0
        %538 = vmatpush1.bf16.msra.mxu0 0
        %539 = vmatprep.subr.bf16.mxu0 0
        %540 = vmatpush1.bf16.msra.mxu0 0
        %541 = vmatprep.subr.bf16.mxu0 0
        %542 = vmatpush1.bf16.msra.mxu0 0
        %543 = vmatprep.subr.bf16.mxu0 %v532
        %544 = vmatpush1.bf16.msra.mxu0 %v529
        %545 = vmatprep.subr.bf16.mxu0 %v512
        %546 = vmatpush1.bf16.msra.mxu0 %v511
        %547 = vmatprep.subr.bf16.mxu0 %v509
        %548 = vmatpush1.bf16.msra.mxu0 %v508
        %549 = vmatprep.subr.bf16.mxu0 %v506
        %550 = vmatpush1.bf16.msra.mxu0 %v505
        %551 = vmatprep.subr.bf16.mxu0 %v503
        %552 = vmatpush1.bf16.msra.mxu0 %v502
        %553 = vmatprep.subr.bf16.mxu0 0
        %554 = vmatpush2.bf16.msra.mxu0 0
        %555 = vmatprep.subr.bf16.mxu0 0
        %556 = vmatpush2.bf16.msra.mxu0 0
        %557 = vmatprep.subr.bf16.mxu0 0
        %558 = vmatpush2.bf16.msra.mxu0 0
        %559 = vmatprep.subr.bf16.mxu0 0
        %560 = vmatpush2.bf16.msra.mxu0 0
        %561 = vmatprep.subr.bf16.mxu0 0
        %562 = vmatpush2.bf16.msra.mxu0 0
        %563 = vmatprep.subr.bf16.mxu0 0
        %564 = vmatpush2.bf16.msra.mxu0 0
        %565 = vmatprep.subr.bf16.mxu0 0
        %566 = vmatpush2.bf16.msra.mxu0 0
        %567 = vmatprep.subr.bf16.mxu0 0
        %568 = vmatpush2.bf16.msra.mxu0 0
        %569 = vmatprep.mubr.bf16.mxu0 0
        %570 = vmatmul.mubr.bf16.gmra.mxu0 %v525
        %v571 = vpop.f32.mrf.mxu0
        %v572 = vadd.f32 %v521, %v571
        %v573 = vpop.f32.mrf.mxu0
        %v574 = vadd.f32 %v521, %v573
        %v575 = vpop.f32.mrf.mxu0
        %v576 = vpop.f32.mrf.mxu0
        %577 = vdwg.mxu0
        %578 = vmatprep.subr.bf16.mxu0 0
        %579 = vmatpush1.bf16.msra.mxu0 0
        %580 = vmatprep.subr.bf16.mxu0 0
        %581 = vmatpush1.bf16.msra.mxu0 0
        %582 = vmatprep.subr.bf16.mxu0 0
        %583 = vmatpush1.bf16.msra.mxu0 0
        %584 = vmatprep.subr.bf16.mxu0 0
        %585 = vmatpush1.bf16.msra.mxu0 %v535
        %586 = vmatprep.subr.bf16.mxu0 0
        %587 = vmatpush1.bf16.msra.mxu0 %v513
        %588 = vmatprep.subr.bf16.mxu0 0
        %589 = vmatpush1.bf16.msra.mxu0 %v510
        %590 = vmatprep.subr.bf16.mxu0 0
        %591 = vmatpush1.bf16.msra.mxu0 %v507
        %592 = vmatprep.subr.bf16.mxu0 0
        %593 = vmatpush1.bf16.msra.mxu0 %v504
        %594 = vmatprep.subr.bf16.mxu0 0
        %595 = vmatpush2.bf16.msra.mxu0 0
        %596 = vmatprep.subr.bf16.mxu0 0
        %597 = vmatpush2.bf16.msra.mxu0 0
        %598 = vmatprep.subr.bf16.mxu0 0
        %599 = vmatpush2.bf16.msra.mxu0 0
        %600 = vmatprep.subr.bf16.mxu0 0
        %601 = vmatpush2.bf16.msra.mxu0 0
        %602 = vmatprep.subr.bf16.mxu0 0
        %603 = vmatpush2.bf16.msra.mxu0 0
        %604 = vmatprep.subr.bf16.mxu0 0
        %605 = vmatpush2.bf16.msra.mxu0 0
        %606 = vmatprep.subr.bf16.mxu0 0
        %607 = vmatpush2.bf16.msra.mxu0 0
        %608 = vmatprep.subr.bf16.mxu0 0
        %609 = vmatpush2.bf16.msra.mxu0 0
        %610 = vmatprep.mubr.bf16.mxu0 0
        %611 = vmatmul.mubr.bf16.gmra.mxu0 %v525
        %v612 = vpop.f32.mrf.mxu0
        %v613 = vadd.f32 %v521, %v612
        %v614 = vpop.f32.mrf.mxu0
        %v615 = vpop.f32.mrf.mxu0
        %v616 = vpop.f32.mrf.mxu0
        %617 = vdwg.mxu0
        %v618 = vmax.f32 %v572, 0.0
        %v619 = vmax.f32 %v574, 0.0
        %v620 = vmax.f32 %v613, 0.0
        %v621 = vsel %vm258, 1, 0
        %v622 = vlaneseq
        %v623 = vshrl.u32 %v622, 7
        %v624 = vsub.s32 0, %v623
        %v625 = vrot.slane %v621, %v624
        %v626 = vlaneseq
        %v627 = vshrl.u32 %v626, 7
        %v628 = vsub.s32 1, %v627
        %v629 = vrot.slane %v621, %v628
        %v630 = vlaneseq
        %v631 = vshrl.u32 %v630, 7
        %v632 = vsub.s32 2, %v631
        %v633 = vrot.slane %v621, %v632
        %vm634 = vcmp.eq.s32.totalorder %v625, 1
        %vm635 = vcmp.eq.s32.totalorder %v629, 1
        %vm636 = vcmp.eq.s32.totalorder %v633, 1
        %v637 = vsel %vm634, %v618, 0.0
        %v638 = vsel %vm635, %v619, 0.0
        %v639 = vsel %vm636, %v620, 0.0
        %643 = vrot.lane.b32.xlu0 %v637, 19
        %v644 = vpop.permute.xlu0 %643
        %645 = vrot.lane.b32.xlu0 %v638, 19
        %v646 = vpop.permute.xlu0 %645
        %647 = vrot.lane.b32.xlu0 %v639, 19
        %v648 = vpop.permute.xlu0 %647
        %vm649 = vcmask 154624
        %v650 = vsel %vm649, %v644, %v646
        %v651 = vsel %vm649, %v646, %v648
        %vm655 = vcmask 1047704
        %656 = vst.msk [vmem:[#allocation2] sm:$0xff] %vm655, %v644
        %657 = vst [vmem:[#allocation2 + $0x8] sm:$0xff] %v650
        %vm658 = vcmask 416768
        %659 = vst.msk [vmem:[#allocation2 + $0x10] sm:$0xff] %vm658, %v651
        %v660 = vld [vmem:[#allocation2] sm:$0xff]
        %v661 = vld [vmem:[#allocation2 + $0x8] sm:$0xff]
        %v662 = vld [vmem:[#allocation2 + $0x10] sm:$0xff]
        %663 = vst [vmem:[#allocation3] sm:$0xff] %v660
        %664 = vst [vmem:[#allocation3 + $0x8] sm:$0xff] %v661
        %665 = vst [vmem:[#allocation3 + $0x10] sm:$0xff] %v662
        %v666 = vld [vmem:[#allocation2] sm:$0xff]
        %v667 = vld [vmem:[#allocation2 + $0x8] sm:$0xff]
        %v668 = vld [vmem:[#allocation2 + $0x10] sm:$0xff]
        %v669 = vld [vmem:[#allocation2 + $0x18] sm:$0xff]
        %674 = vrot.lane.b32.xlu0 %v666, 127
        %v675 = vpop.permute.xlu0 %674
        %676 = vrot.lane.b32.xlu0 %v667, 127
        %v677 = vpop.permute.xlu0 %676
        %678 = vrot.lane.b32.xlu0 %v668, 127
        %v679 = vpop.permute.xlu0 %678
        %680 = vrot.lane.b32.xlu0 %v669, 127
        %v681 = vpop.permute.xlu0 %680
        %v682 = vsel %vm281, %v675, %v677
        %v683 = vsel %vm281, %v677, %v679
        %v684 = vsel %vm281, %v679, %v681
        %688 = vst [vmem:[#allocation3 + $0x18] sm:$0xff] %v682
        %689 = vst [vmem:[#allocation3 + $0x20] sm:$0xff] %v683
        %690 = vst [vmem:[#allocation3 + $0x28] sm:$0xff] %v684
        %v691 = vld [vmem:[#allocation2] sm:$0xff]
        %v692 = vld [vmem:[#allocation2 + $0x8] sm:$0xff]
        %v693 = vld [vmem:[#allocation2 + $0x10] sm:$0xff]
        %v694 = vld [vmem:[#allocation2 + $0x18] sm:$0xff]
        %699 = vrot.lane.b32.xlu0 %v691, 126
        %v700 = vpop.permute.xlu0 %699
        %701 = vrot.lane.b32.xlu0 %v692, 126
        %v702 = vpop.permute.xlu0 %701
        %703 = vrot.lane.b32.xlu0 %v693, 126
        %v704 = vpop.permute.xlu0 %703
        %705 = vrot.lane.b32.xlu0 %v694, 126
        %v706 = vpop.permute.xlu0 %705
        %v707 = vsel %vm307, %v700, %v702
        %v708 = vsel %vm307, %v702, %v704
        %v709 = vsel %vm307, %v704, %v706
        %713 = vst [vmem:[#allocation3 + $0x30] sm:$0xff] %v707
        %714 = vst [vmem:[#allocation3 + $0x38] sm:$0xff] %v708
        %715 = vst [vmem:[#allocation3 + $0x40] sm:$0xff] %v709
        %v716 = vld [vmem:[#allocation2] sm:$0xff]
        %v717 = vld [vmem:[#allocation2 + $0x8] sm:$0xff]
        %v718 = vld [vmem:[#allocation2 + $0x10] sm:$0xff]
        %v719 = vld [vmem:[#allocation2 + $0x18] sm:$0xff]
        %724 = vrot.lane.b32.xlu0 %v716, 110
        %v725 = vpop.permute.xlu0 %724
        %726 = vrot.lane.b32.xlu0 %v717, 110
        %v727 = vpop.permute.xlu0 %726
        %728 = vrot.lane.b32.xlu0 %v718, 110
        %v729 = vpop.permute.xlu0 %728
        %730 = vrot.lane.b32.xlu0 %v719, 110
        %v731 = vpop.permute.xlu0 %730
        %v732 = vsel %vm333, %v725, %v727
        %v733 = vsel %vm333, %v727, %v729
        %v734 = vsel %vm333, %v729, %v731
        %738 = vst [vmem:[#allocation3 + $0x48] sm:$0xff] %v732
        %739 = vst [vmem:[#allocation3 + $0x50] sm:$0xff] %v733
        %740 = vst [vmem:[#allocation3 + $0x58] sm:$0xff] %v734
        %v741 = vld [vmem:[#allocation2] sm:$0xff]
        %v742 = vld [vmem:[#allocation2 + $0x8] sm:$0xff]
        %v743 = vld [vmem:[#allocation2 + $0x10] sm:$0xff]
        %v744 = vld [vmem:[#allocation2 + $0x18] sm:$0xff]
        %749 = vrot.lane.b32.xlu0 %v741, 109
        %v750 = vpop.permute.xlu0 %749
        %751 = vrot.lane.b32.xlu0 %v742, 109
        %v752 = vpop.permute.xlu0 %751
        %753 = vrot.lane.b32.xlu0 %v743, 109
        %v754 = vpop.permute.xlu0 %753
        %755 = vrot.lane.b32.xlu0 %v744, 109
        %v756 = vpop.permute.xlu0 %755
        %v757 = vsel %vm359, %v750, %v752
        %v758 = vsel %vm359, %v752, %v754
        %v759 = vsel %vm359, %v754, %v756
        %763 = vst [vmem:[#allocation3 + $0x60] sm:$0xff] %v757
        %764 = vst [vmem:[#allocation3 + $0x68] sm:$0xff] %v758
        %765 = vst [vmem:[#allocation3 + $0x70] sm:$0xff] %v759
        %v766 = vld [vmem:[#allocation2] sm:$0xff]
        %v767 = vld [vmem:[#allocation2 + $0x8] sm:$0xff]
        %v768 = vld [vmem:[#allocation2 + $0x10] sm:$0xff]
        %v769 = vld [vmem:[#allocation2 + $0x18] sm:$0xff]
        %774 = vrot.lane.b32.xlu0 %v766, 108
        %v775 = vpop.permute.xlu0 %774
        %776 = vrot.lane.b32.xlu0 %v767, 108
        %v777 = vpop.permute.xlu0 %776
        %778 = vrot.lane.b32.xlu0 %v768, 108
        %v779 = vpop.permute.xlu0 %778
        %780 = vrot.lane.b32.xlu0 %v769, 108
        %v781 = vpop.permute.xlu0 %780
        %v782 = vsel %vm385, %v775, %v777
        %v783 = vsel %vm385, %v777, %v779
        %v784 = vsel %vm385, %v779, %v781
        %788 = vst [vmem:[#allocation3 + $0x78] sm:$0xff] %v782
        %789 = vst [vmem:[#allocation3 + $0x80] sm:$0xff] %v783
        %790 = vst [vmem:[#allocation3 + $0x88] sm:$0xff] %v784
        %v791 = vld [vmem:[#allocation2] sm:$0xff]
        %v792 = vld [vmem:[#allocation2 + $0x8] sm:$0xff]
        %v793 = vld [vmem:[#allocation2 + $0x10] sm:$0xff]
        %v794 = vld [vmem:[#allocation2 + $0x18] sm:$0xff]
        %799 = vrot.lane.b32.xlu0 %v791, 92
        %v800 = vpop.permute.xlu0 %799
        %801 = vrot.lane.b32.xlu0 %v792, 92
        %v802 = vpop.permute.xlu0 %801
        %803 = vrot.lane.b32.xlu0 %v793, 92
        %v804 = vpop.permute.xlu0 %803
        %805 = vrot.lane.b32.xlu0 %v794, 92
        %v806 = vpop.permute.xlu0 %805
        %v807 = vsel %vm411, %v800, %v802
        %v808 = vsel %vm411, %v802, %v804
        %v809 = vsel %vm411, %v804, %v806
        %813 = vst [vmem:[#allocation3 + $0x90] sm:$0xff] %v807
        %814 = vst [vmem:[#allocation3 + $0x98] sm:$0xff] %v808
        %815 = vst [vmem:[#allocation3 + $0xa0] sm:$0xff] %v809
        %v816 = vld [vmem:[#allocation2] sm:$0xff]
        %v817 = vld [vmem:[#allocation2 + $0x8] sm:$0xff]
        %v818 = vld [vmem:[#allocation2 + $0x10] sm:$0xff]
        %v819 = vld [vmem:[#allocation2 + $0x18] sm:$0xff]
        %824 = vrot.lane.b32.xlu0 %v816, 91
        %v825 = vpop.permute.xlu0 %824
        %826 = vrot.lane.b32.xlu0 %v817, 91
        %v827 = vpop.permute.xlu0 %826
        %828 = vrot.lane.b32.xlu0 %v818, 91
        %v829 = vpop.permute.xlu0 %828
        %830 = vrot.lane.b32.xlu0 %v819, 91
        %v831 = vpop.permute.xlu0 %830
        %v832 = vsel %vm437, %v825, %v827
        %v833 = vsel %vm437, %v827, %v829
        %v834 = vsel %vm437, %v829, %v831
        %838 = vst [vmem:[#allocation3 + $0xa8] sm:$0xff] %v832
        %839 = vst [vmem:[#allocation3 + $0xb0] sm:$0xff] %v833
        %840 = vst [vmem:[#allocation3 + $0xb8] sm:$0xff] %v834
        %v841 = vld [vmem:[#allocation2] sm:$0xff]
        %v842 = vld [vmem:[#allocation2 + $0x8] sm:$0xff]
        %v843 = vld [vmem:[#allocation2 + $0x10] sm:$0xff]
        %v844 = vld [vmem:[#allocation2 + $0x18] sm:$0xff]
        %849 = vrot.lane.b32.xlu0 %v841, 90
        %v850 = vpop.permute.xlu0 %849
        %851 = vrot.lane.b32.xlu0 %v842, 90
        %v852 = vpop.permute.xlu0 %851
        %853 = vrot.lane.b32.xlu0 %v843, 90
        %v854 = vpop.permute.xlu0 %853
        %855 = vrot.lane.b32.xlu0 %v844, 90
        %v856 = vpop.permute.xlu0 %855
        %v857 = vsel %vm463, %v850, %v852
        %v858 = vsel %vm463, %v852, %v854
        %v859 = vsel %vm463, %v854, %v856
        %863 = vst [vmem:[#allocation3 + $0xc0] sm:$0xff] %v857
        %864 = vst [vmem:[#allocation3 + $0xc8] sm:$0xff] %v858
        %865 = vst [vmem:[#allocation3 + $0xd0] sm:$0xff] %v859
        %s866 = scalar_lea.vmem %s1, 8
        %v867 = vld [vmem:[%s866] sm:$0xff]
        %v868 = vpack.c.bf16 %v867, %v867
        %v869 = vld [vmem:[#allocation3] sm:$0xff]
        %v870 = vld [vmem:[#allocation3 + $0x8] sm:$0xff]
        %v871 = vld [vmem:[#allocation3 + $0x10] sm:$0xff]
        %v872 = vld [vmem:[#allocation3 + $0x18] sm:$0xff]
        %v873 = vld [vmem:[#allocation3 + $0x20] sm:$0xff]
        %v874 = vld [vmem:[#allocation3 + $0x28] sm:$0xff]
        %v875 = vld [vmem:[#allocation3 + $0x30] sm:$0xff]
        %v876 = vld [vmem:[#allocation3 + $0x38] sm:$0xff]
        %v877 = vld [vmem:[#allocation3 + $0x40] sm:$0xff]
        %v878 = vld [vmem:[#allocation3 + $0x48] sm:$0xff]
        %v879 = vld [vmem:[#allocation3 + $0x50] sm:$0xff]
        %v880 = vld [vmem:[#allocation3 + $0x58] sm:$0xff]
        %v881 = vld [vmem:[#allocation3 + $0x60] sm:$0xff]
        %v882 = vld [vmem:[#allocation3 + $0x68] sm:$0xff]
        %v883 = vld [vmem:[#allocation3 + $0x70] sm:$0xff]
        %v884 = vld [vmem:[#allocation3 + $0x78] sm:$0xff]
        %v885 = vld [vmem:[#allocation3 + $0x80] sm:$0xff]
        %v886 = vld [vmem:[#allocation3 + $0x88] sm:$0xff]
        %v887 = vld [vmem:[#allocation3 + $0x90] sm:$0xff]
        %v888 = vld [vmem:[#allocation3 + $0x98] sm:$0xff]
        %v889 = vld [vmem:[#allocation3 + $0xa0] sm:$0xff]
        %v890 = vld [vmem:[#allocation3 + $0xa8] sm:$0xff]
        %v891 = vld [vmem:[#allocation3 + $0xb0] sm:$0xff]
        %v892 = vld [vmem:[#allocation3 + $0xb8] sm:$0xff]
        %v893 = vld [vmem:[#allocation3 + $0xc0] sm:$0xff]
        %v894 = vld [vmem:[#allocation3 + $0xc8] sm:$0xff]
        %v895 = vld [vmem:[#allocation3 + $0xd0] sm:$0xff]
        %v896 = vpack.c.bf16 %v872, %v869
        %v897 = vpack.c.bf16 %v873, %v870
        %v898 = vpack.c.bf16 %v874, %v871
        %v899 = vpack.c.bf16 %v878, %v875
        %v900 = vpack.c.bf16 %v879, %v876
        %v901 = vpack.c.bf16 %v880, %v877
        %v902 = vpack.c.bf16 %v884, %v881
        %v903 = vpack.c.bf16 %v885, %v882
        %v904 = vpack.c.bf16 %v886, %v883
        %v905 = vpack.c.bf16 %v890, %v887
        %v906 = vpack.c.bf16 %v891, %v888
        %v907 = vpack.c.bf16 %v892, %v889
        %v908 = vpack.c.bf16 %v893, %v893
        %v909 = vpack.c.bf16 %v894, %v894
        %v910 = vpack.c.bf16 %v895, %v895
        %s911 = scalar_lea.vmem %s2, 8
        %v912 = vld [vmem:[%s911] sm:$0xff]
        %914 = vset.pattern.permute.xlu0 0
        %915 = vperm.xlu0 %914, %v912
        %v916 = vpop.permute.xlu0 %915
        %v919 = vsel %vm523, %v868, 0
        %v922 = vsel %vm527, %v908, 0
        %v925 = vsel %vm527, %v909, 0
        %v928 = vsel %vm527, %v910, 0
        %930 = vmatprep.subr.bf16.mxu0 0
        %931 = vmatpush1.bf16.msra.mxu0 0
        %932 = vmatprep.subr.bf16.mxu0 0
        %933 = vmatpush1.bf16.msra.mxu0 0
        %934 = vmatprep.subr.bf16.mxu0 0
        %935 = vmatpush1.bf16.msra.mxu0 0
        %936 = vmatprep.subr.bf16.mxu0 %v925
        %937 = vmatpush1.bf16.msra.mxu0 %v922
        %938 = vmatprep.subr.bf16.mxu0 %v906
        %939 = vmatpush1.bf16.msra.mxu0 %v905
        %940 = vmatprep.subr.bf16.mxu0 %v903
        %941 = vmatpush1.bf16.msra.mxu0 %v902
        %942 = vmatprep.subr.bf16.mxu0 %v900
        %943 = vmatpush1.bf16.msra.mxu0 %v899
        %944 = vmatprep.subr.bf16.mxu0 %v897
        %945 = vmatpush1.bf16.msra.mxu0 %v896
        %946 = vmatprep.subr.bf16.mxu0 0
        %947 = vmatpush2.bf16.msra.mxu0 0
        %948 = vmatprep.subr.bf16.mxu0 0
        %949 = vmatpush2.bf16.msra.mxu0 0
        %950 = vmatprep.subr.bf16.mxu0 0
        %951 = vmatpush2.bf16.msra.mxu0 0
        %952 = vmatprep.subr.bf16.mxu0 0
        %953 = vmatpush2.bf16.msra.mxu0 0
        %954 = vmatprep.subr.bf16.mxu0 0
        %955 = vmatpush2.bf16.msra.mxu0 0
        %956 = vmatprep.subr.bf16.mxu0 0
        %957 = vmatpush2.bf16.msra.mxu0 0
        %958 = vmatprep.subr.bf16.mxu0 0
        %959 = vmatpush2.bf16.msra.mxu0 0
        %960 = vmatprep.subr.bf16.mxu0 0
        %961 = vmatpush2.bf16.msra.mxu0 0
        %962 = vmatprep.mubr.bf16.mxu0 0
        %963 = vmatmul.mubr.bf16.gmra.mxu0 %v919
        %v964 = vpop.f32.mrf.mxu0
        %v965 = vadd.f32 %v916, %v964
        %v966 = vpop.f32.mrf.mxu0
        %v967 = vadd.f32 %v916, %v966
        %v968 = vpop.f32.mrf.mxu0
        %v969 = vpop.f32.mrf.mxu0
        %970 = vdwg.mxu0
        %971 = vmatprep.subr.bf16.mxu0 0
        %972 = vmatpush1.bf16.msra.mxu0 0
        %973 = vmatprep.subr.bf16.mxu0 0
        %974 = vmatpush1.bf16.msra.mxu0 0
        %975 = vmatprep.subr.bf16.mxu0 0
        %976 = vmatpush1.bf16.msra.mxu0 0
        %977 = vmatprep.subr.bf16.mxu0 0
        %978 = vmatpush1.bf16.msra.mxu0 %v928
        %979 = vmatprep.subr.bf16.mxu0 0
        %980 = vmatpush1.bf16.msra.mxu0 %v907
        %981 = vmatprep.subr.bf16.mxu0 0
        %982 = vmatpush1.bf16.msra.mxu0 %v904
        %983 = vmatprep.subr.bf16.mxu0 0
        %984 = vmatpush1.bf16.msra.mxu0 %v901
        %985 = vmatprep.subr.bf16.mxu0 0
        %986 = vmatpush1.bf16.msra.mxu0 %v898
        %987 = vmatprep.subr.bf16.mxu0 0
        %988 = vmatpush2.bf16.msra.mxu0 0
        %989 = vmatprep.subr.bf16.mxu0 0
        %990 = vmatpush2.bf16.msra.mxu0 0
        %991 = vmatprep.subr.bf16.mxu0 0
        %992 = vmatpush2.bf16.msra.mxu0 0
        %993 = vmatprep.subr.bf16.mxu0 0
        %994 = vmatpush2.bf16.msra.mxu0 0
        %995 = vmatprep.subr.bf16.mxu0 0
        %996 = vmatpush2.bf16.msra.mxu0 0
        %997 = vmatprep.subr.bf16.mxu0 0
        %998 = vmatpush2.bf16.msra.mxu0 0
        %999 = vmatprep.subr.bf16.mxu0 0
        %1000 = vmatpush2.bf16.msra.mxu0 0
        %1001 = vmatprep.subr.bf16.mxu0 0
        %1002 = vmatpush2.bf16.msra.mxu0 0
        %1003 = vmatprep.mubr.bf16.mxu0 0
        %1004 = vmatmul.mubr.bf16.gmra.mxu0 %v919
        %v1005 = vpop.f32.mrf.mxu0
        %v1006 = vadd.f32 %v916, %v1005
        %v1007 = vpop.f32.mrf.mxu0
        %v1008 = vpop.f32.mrf.mxu0
        %v1009 = vpop.f32.mrf.mxu0
        %1010 = vdwg.mxu0
        %v1011 = vmax.f32 %v965, 0.0
        %v1012 = vmax.f32 %v967, 0.0
        %v1013 = vmax.f32 %v1006, 0.0
        %v1014 = vsel %vm634, %v1011, 0.0
        %v1015 = vsel %vm635, %v1012, 0.0
        %v1016 = vsel %vm636, %v1013, 0.0
        %1020 = vrot.lane.b32.xlu0 %v1014, 19
        %v1021 = vpop.permute.xlu0 %1020
        %1022 = vrot.lane.b32.xlu0 %v1015, 19
        %v1023 = vpop.permute.xlu0 %1022
        %1024 = vrot.lane.b32.xlu0 %v1016, 19
        %v1025 = vpop.permute.xlu0 %1024
        %v1026 = vsel %vm649, %v1021, %v1023
        %v1027 = vsel %vm649, %v1023, %v1025
        %1031 = vst.msk [vmem:[#allocation2] sm:$0xff] %vm655, %v1021
        %1032 = vst [vmem:[#allocation2 + $0x8] sm:$0xff] %v1026
        %1033 = vst.msk [vmem:[#allocation2 + $0x10] sm:$0xff] %vm658, %v1027
        %v1034 = vld [vmem:[#allocation2] sm:$0xff]
        %v1035 = vld [vmem:[#allocation2 + $0x8] sm:$0xff]
        %v1036 = vld [vmem:[#allocation2 + $0x10] sm:$0xff]
        %1037 = vst [vmem:[#allocation3] sm:$0xff] %v1034
        %1038 = vst [vmem:[#allocation3 + $0x8] sm:$0xff] %v1035
        %1039 = vst [vmem:[#allocation3 + $0x10] sm:$0xff] %v1036
        %v1040 = vld [vmem:[#allocation2] sm:$0xff]
        %v1041 = vld [vmem:[#allocation2 + $0x8] sm:$0xff]
        %v1042 = vld [vmem:[#allocation2 + $0x10] sm:$0xff]
        %v1043 = vld [vmem:[#allocation2 + $0x18] sm:$0xff]
        %1048 = vrot.lane.b32.xlu0 %v1040, 127
        %v1049 = vpop.permute.xlu0 %1048
        %1050 = vrot.lane.b32.xlu0 %v1041, 127
        %v1051 = vpop.permute.xlu0 %1050
        %1052 = vrot.lane.b32.xlu0 %v1042, 127
        %v1053 = vpop.permute.xlu0 %1052
        %1054 = vrot.lane.b32.xlu0 %v1043, 127
        %v1055 = vpop.permute.xlu0 %1054
        %v1056 = vsel %vm281, %v1049, %v1051
        %v1057 = vsel %vm281, %v1051, %v1053
        %v1058 = vsel %vm281, %v1053, %v1055
        %1062 = vst [vmem:[#allocation3 + $0x18] sm:$0xff] %v1056
        %1063 = vst [vmem:[#allocation3 + $0x20] sm:$0xff] %v1057
        %1064 = vst [vmem:[#allocation3 + $0x28] sm:$0xff] %v1058
        %v1065 = vld [vmem:[#allocation2] sm:$0xff]
        %v1066 = vld [vmem:[#allocation2 + $0x8] sm:$0xff]
        %v1067 = vld [vmem:[#allocation2 + $0x10] sm:$0xff]
        %v1068 = vld [vmem:[#allocation2 + $0x18] sm:$0xff]
        %1073 = vrot.lane.b32.xlu0 %v1065, 126
        %v1074 = vpop.permute.xlu0 %1073
        %1075 = vrot.lane.b32.xlu0 %v1066, 126
        %v1076 = vpop.permute.xlu0 %1075
        %1077 = vrot.lane.b32.xlu0 %v1067, 126
        %v1078 = vpop.permute.xlu0 %1077
        %1079 = vrot.lane.b32.xlu0 %v1068, 126
        %v1080 = vpop.permute.xlu0 %1079
        %v1081 = vsel %vm307, %v1074, %v1076
        %v1082 = vsel %vm307, %v1076, %v1078
        %v1083 = vsel %vm307, %v1078, %v1080
        %1087 = vst [vmem:[#allocation3 + $0x30] sm:$0xff] %v1081
        %1088 = vst [vmem:[#allocation3 + $0x38] sm:$0xff] %v1082
        %1089 = vst [vmem:[#allocation3 + $0x40] sm:$0xff] %v1083
        %v1090 = vld [vmem:[#allocation2] sm:$0xff]
        %v1091 = vld [vmem:[#allocation2 + $0x8] sm:$0xff]
        %v1092 = vld [vmem:[#allocation2 + $0x10] sm:$0xff]
        %v1093 = vld [vmem:[#allocation2 + $0x18] sm:$0xff]
        %1098 = vrot.lane.b32.xlu0 %v1090, 110
        %v1099 = vpop.permute.xlu0 %1098
        %1100 = vrot.lane.b32.xlu0 %v1091, 110
        %v1101 = vpop.permute.xlu0 %1100
        %1102 = vrot.lane.b32.xlu0 %v1092, 110
        %v1103 = vpop.permute.xlu0 %1102
        %1104 = vrot.lane.b32.xlu0 %v1093, 110
        %v1105 = vpop.permute.xlu0 %1104
        %v1106 = vsel %vm333, %v1099, %v1101
        %v1107 = vsel %vm333, %v1101, %v1103
        %v1108 = vsel %vm333, %v1103, %v1105
        %1112 = vst [vmem:[#allocation3 + $0x48] sm:$0xff] %v1106
        %1113 = vst [vmem:[#allocation3 + $0x50] sm:$0xff] %v1107
        %1114 = vst [vmem:[#allocation3 + $0x58] sm:$0xff] %v1108
        %v1115 = vld [vmem:[#allocation2] sm:$0xff]
        %v1116 = vld [vmem:[#allocation2 + $0x8] sm:$0xff]
        %v1117 = vld [vmem:[#allocation2 + $0x10] sm:$0xff]
        %v1118 = vld [vmem:[#allocation2 + $0x18] sm:$0xff]
        %1123 = vrot.lane.b32.xlu0 %v1115, 109
        %v1124 = vpop.permute.xlu0 %1123
        %1125 = vrot.lane.b32.xlu0 %v1116, 109
        %v1126 = vpop.permute.xlu0 %1125
        %1127 = vrot.lane.b32.xlu0 %v1117, 109
        %v1128 = vpop.permute.xlu0 %1127
        %1129 = vrot.lane.b32.xlu0 %v1118, 109
        %v1130 = vpop.permute.xlu0 %1129
        %v1131 = vsel %vm359, %v1124, %v1126
        %v1132 = vsel %vm359, %v1126, %v1128
        %v1133 = vsel %vm359, %v1128, %v1130
        %1137 = vst [vmem:[#allocation3 + $0x60] sm:$0xff] %v1131
        %1138 = vst [vmem:[#allocation3 + $0x68] sm:$0xff] %v1132
        %1139 = vst [vmem:[#allocation3 + $0x70] sm:$0xff] %v1133
        %v1140 = vld [vmem:[#allocation2] sm:$0xff]
        %v1141 = vld [vmem:[#allocation2 + $0x8] sm:$0xff]
        %v1142 = vld [vmem:[#allocation2 + $0x10] sm:$0xff]
        %v1143 = vld [vmem:[#allocation2 + $0x18] sm:$0xff]
        %1148 = vrot.lane.b32.xlu0 %v1140, 108
        %v1149 = vpop.permute.xlu0 %1148
        %1150 = vrot.lane.b32.xlu0 %v1141, 108
        %v1151 = vpop.permute.xlu0 %1150
        %1152 = vrot.lane.b32.xlu0 %v1142, 108
        %v1153 = vpop.permute.xlu0 %1152
        %1154 = vrot.lane.b32.xlu0 %v1143, 108
        %v1155 = vpop.permute.xlu0 %1154
        %v1156 = vsel %vm385, %v1149, %v1151
        %v1157 = vsel %vm385, %v1151, %v1153
        %v1158 = vsel %vm385, %v1153, %v1155
        %1162 = vst [vmem:[#allocation3 + $0x78] sm:$0xff] %v1156
        %1163 = vst [vmem:[#allocation3 + $0x80] sm:$0xff] %v1157
        %1164 = vst [vmem:[#allocation3 + $0x88] sm:$0xff] %v1158
        %v1165 = vld [vmem:[#allocation2] sm:$0xff]
        %v1166 = vld [vmem:[#allocation2 + $0x8] sm:$0xff]
        %v1167 = vld [vmem:[#allocation2 + $0x10] sm:$0xff]
        %v1168 = vld [vmem:[#allocation2 + $0x18] sm:$0xff]
        %1173 = vrot.lane.b32.xlu0 %v1165, 92
        %v1174 = vpop.permute.xlu0 %1173
        %1175 = vrot.lane.b32.xlu0 %v1166, 92
        %v1176 = vpop.permute.xlu0 %1175
        %1177 = vrot.lane.b32.xlu0 %v1167, 92
        %v1178 = vpop.permute.xlu0 %1177
        %1179 = vrot.lane.b32.xlu0 %v1168, 92
        %v1180 = vpop.permute.xlu0 %1179
        %v1181 = vsel %vm411, %v1174, %v1176
        %v1182 = vsel %vm411, %v1176, %v1178
        %v1183 = vsel %vm411, %v1178, %v1180
        %1187 = vst [vmem:[#allocation3 + $0x90] sm:$0xff] %v1181
        %1188 = vst [vmem:[#allocation3 + $0x98] sm:$0xff] %v1182
        %1189 = vst [vmem:[#allocation3 + $0xa0] sm:$0xff] %v1183
        %v1190 = vld [vmem:[#allocation2] sm:$0xff]
        %v1191 = vld [vmem:[#allocation2 + $0x8] sm:$0xff]
        %v1192 = vld [vmem:[#allocation2 + $0x10] sm:$0xff]
        %v1193 = vld [vmem:[#allocation2 + $0x18] sm:$0xff]
        %1198 = vrot.lane.b32.xlu0 %v1190, 91
        %v1199 = vpop.permute.xlu0 %1198
        %1200 = vrot.lane.b32.xlu0 %v1191, 91
        %v1201 = vpop.permute.xlu0 %1200
        %1202 = vrot.lane.b32.xlu0 %v1192, 91
        %v1203 = vpop.permute.xlu0 %1202
        %1204 = vrot.lane.b32.xlu0 %v1193, 91
        %v1205 = vpop.permute.xlu0 %1204
        %v1206 = vsel %vm437, %v1199, %v1201
        %v1207 = vsel %vm437, %v1201, %v1203
        %v1208 = vsel %vm437, %v1203, %v1205
        %1212 = vst [vmem:[#allocation3 + $0xa8] sm:$0xff] %v1206
        %1213 = vst [vmem:[#allocation3 + $0xb0] sm:$0xff] %v1207
        %1214 = vst [vmem:[#allocation3 + $0xb8] sm:$0xff] %v1208
        %v1215 = vld [vmem:[#allocation2] sm:$0xff]
        %v1216 = vld [vmem:[#allocation2 + $0x8] sm:$0xff]
        %v1217 = vld [vmem:[#allocation2 + $0x10] sm:$0xff]
        %v1218 = vld [vmem:[#allocation2 + $0x18] sm:$0xff]
        %1223 = vrot.lane.b32.xlu0 %v1215, 90
        %v1224 = vpop.permute.xlu0 %1223
        %1225 = vrot.lane.b32.xlu0 %v1216, 90
        %v1226 = vpop.permute.xlu0 %1225
        %1227 = vrot.lane.b32.xlu0 %v1217, 90
        %v1228 = vpop.permute.xlu0 %1227
        %1229 = vrot.lane.b32.xlu0 %v1218, 90
        %v1230 = vpop.permute.xlu0 %1229
        %v1231 = vsel %vm463, %v1224, %v1226
        %v1232 = vsel %vm463, %v1226, %v1228
        %v1233 = vsel %vm463, %v1228, %v1230
        %1237 = vst [vmem:[#allocation3 + $0xc0] sm:$0xff] %v1231
        %1238 = vst [vmem:[#allocation3 + $0xc8] sm:$0xff] %v1232
        %1239 = vst [vmem:[#allocation3 + $0xd0] sm:$0xff] %v1233
        %s1240 = scalar_lea.vmem %s1, 16
        %v1241 = vld [vmem:[%s1240] sm:$0xff]
        %v1242 = vpack.c.bf16 %v1241, %v1241
        %v1243 = vld [vmem:[#allocation3] sm:$0xff]
        %v1244 = vld [vmem:[#allocation3 + $0x8] sm:$0xff]
        %v1245 = vld [vmem:[#allocation3 + $0x10] sm:$0xff]
        %v1246 = vld [vmem:[#allocation3 + $0x18] sm:$0xff]
        %v1247 = vld [vmem:[#allocation3 + $0x20] sm:$0xff]
        %v1248 = vld [vmem:[#allocation3 + $0x28] sm:$0xff]
        %v1249 = vld [vmem:[#allocation3 + $0x30] sm:$0xff]
        %v1250 = vld [vmem:[#allocation3 + $0x38] sm:$0xff]
        %v1251 = vld [vmem:[#allocation3 + $0x40] sm:$0xff]
        %v1252 = vld [vmem:[#allocation3 + $0x48] sm:$0xff]
        %v1253 = vld [vmem:[#allocation3 + $0x50] sm:$0xff]
        %v1254 = vld [vmem:[#allocation3 + $0x58] sm:$0xff]
        %v1255 = vld [vmem:[#allocation3 + $0x60] sm:$0xff]
        %v1256 = vld [vmem:[#allocation3 + $0x68] sm:$0xff]
        %v1257 = vld [vmem:[#allocation3 + $0x70] sm:$0xff]
        %v1258 = vld [vmem:[#allocation3 + $0x78] sm:$0xff]
        %v1259 = vld [vmem:[#allocation3 + $0x80] sm:$0xff]
        %v1260 = vld [vmem:[#allocation3 + $0x88] sm:$0xff]
        %v1261 = vld [vmem:[#allocation3 + $0x90] sm:$0xff]
        %v1262 = vld [vmem:[#allocation3 + $0x98] sm:$0xff]
        %v1263 = vld [vmem:[#allocation3 + $0xa0] sm:$0xff]
        %v1264 = vld [vmem:[#allocation3 + $0xa8] sm:$0xff]
        %v1265 = vld [vmem:[#allocation3 + $0xb0] sm:$0xff]
        %v1266 = vld [vmem:[#allocation3 + $0xb8] sm:$0xff]
        %v1267 = vld [vmem:[#allocation3 + $0xc0] sm:$0xff]
        %v1268 = vld [vmem:[#allocation3 + $0xc8] sm:$0xff]
        %v1269 = vld [vmem:[#allocation3 + $0xd0] sm:$0xff]
        %v1270 = vpack.c.bf16 %v1246, %v1243
        %v1271 = vpack.c.bf16 %v1247, %v1244
        %v1272 = vpack.c.bf16 %v1248, %v1245
        %v1273 = vpack.c.bf16 %v1252, %v1249
        %v1274 = vpack.c.bf16 %v1253, %v1250
        %v1275 = vpack.c.bf16 %v1254, %v1251
        %v1276 = vpack.c.bf16 %v1258, %v1255
        %v1277 = vpack.c.bf16 %v1259, %v1256
        %v1278 = vpack.c.bf16 %v1260, %v1257
        %v1279 = vpack.c.bf16 %v1264, %v1261
        %v1280 = vpack.c.bf16 %v1265, %v1262
        %v1281 = vpack.c.bf16 %v1266, %v1263
        %v1282 = vpack.c.bf16 %v1267, %v1267
        %v1283 = vpack.c.bf16 %v1268, %v1268
        %v1284 = vpack.c.bf16 %v1269, %v1269
        %s1285 = scalar_lea.vmem %s2, 16
        %v1286 = vld [vmem:[%s1285] sm:$0xff]
        %1288 = vset.pattern.permute.xlu0 0
        %1289 = vperm.xlu0 %1288, %v1286
        %v1290 = vpop.permute.xlu0 %1289
        %v1293 = vsel %vm523, %v1242, 0
        %v1296 = vsel %vm527, %v1282, 0
        %v1299 = vsel %vm527, %v1283, 0
        %v1302 = vsel %vm527, %v1284, 0
        %1304 = vmatprep.subr.bf16.mxu0 0
        %1305 = vmatpush1.bf16.msra.mxu0 0
        %1306 = vmatprep.subr.bf16.mxu0 0
        %1307 = vmatpush1.bf16.msra.mxu0 0
        %1308 = vmatprep.subr.bf16.mxu0 0
        %1309 = vmatpush1.bf16.msra.mxu0 0
        %1310 = vmatprep.subr.bf16.mxu0 %v1299
        %1311 = vmatpush1.bf16.msra.mxu0 %v1296
        %1312 = vmatprep.subr.bf16.mxu0 %v1280
        %1313 = vmatpush1.bf16.msra.mxu0 %v1279
        %1314 = vmatprep.subr.bf16.mxu0 %v1277
        %1315 = vmatpush1.bf16.msra.mxu0 %v1276
        %1316 = vmatprep.subr.bf16.mxu0 %v1274
        %1317 = vmatpush1.bf16.msra.mxu0 %v1273
        %1318 = vmatprep.subr.bf16.mxu0 %v1271
        %1319 = vmatpush1.bf16.msra.mxu0 %v1270
        %1320 = vmatprep.subr.bf16.mxu0 0
        %1321 = vmatpush2.bf16.msra.mxu0 0
        %1322 = vmatprep.subr.bf16.mxu0 0
        %1323 = vmatpush2.bf16.msra.mxu0 0
        %1324 = vmatprep.subr.bf16.mxu0 0
        %1325 = vmatpush2.bf16.msra.mxu0 0
        %1326 = vmatprep.subr.bf16.mxu0 0
        %1327 = vmatpush2.bf16.msra.mxu0 0
        %1328 = vmatprep.subr.bf16.mxu0 0
        %1329 = vmatpush2.bf16.msra.mxu0 0
        %1330 = vmatprep.subr.bf16.mxu0 0
        %1331 = vmatpush2.bf16.msra.mxu0 0
        %1332 = vmatprep.subr.bf16.mxu0 0
        %1333 = vmatpush2.bf16.msra.mxu0 0
        %1334 = vmatprep.subr.bf16.mxu0 0
        %1335 = vmatpush2.bf16.msra.mxu0 0
        %1336 = vmatprep.mubr.bf16.mxu0 0
        %1337 = vmatmul.mubr.bf16.gmra.mxu0 %v1293
        %v1338 = vpop.f32.mrf.mxu0
        %v1339 = vadd.f32 %v1290, %v1338
        %v1340 = vpop.f32.mrf.mxu0
        %v1341 = vadd.f32 %v1290, %v1340
        %v1342 = vpop.f32.mrf.mxu0
        %v1343 = vpop.f32.mrf.mxu0
        %1344 = vdwg.mxu0
        %1345 = vmatprep.subr.bf16.mxu0 0
        %1346 = vmatpush1.bf16.msra.mxu0 0
        %1347 = vmatprep.subr.bf16.mxu0 0
        %1348 = vmatpush1.bf16.msra.mxu0 0
        %1349 = vmatprep.subr.bf16.mxu0 0
        %1350 = vmatpush1.bf16.msra.mxu0 0
        %1351 = vmatprep.subr.bf16.mxu0 0
        %1352 = vmatpush1.bf16.msra.mxu0 %v1302
        %1353 = vmatprep.subr.bf16.mxu0 0
        %1354 = vmatpush1.bf16.msra.mxu0 %v1281
        %1355 = vmatprep.subr.bf16.mxu0 0
        %1356 = vmatpush1.bf16.msra.mxu0 %v1278
        %1357 = vmatprep.subr.bf16.mxu0 0
        %1358 = vmatpush1.bf16.msra.mxu0 %v1275
        %1359 = vmatprep.subr.bf16.mxu0 0
        %1360 = vmatpush1.bf16.msra.mxu0 %v1272
        %1361 = vmatprep.subr.bf16.mxu0 0
        %1362 = vmatpush2.bf16.msra.mxu0 0
        %1363 = vmatprep.subr.bf16.mxu0 0
        %1364 = vmatpush2.bf16.msra.mxu0 0
        %1365 = vmatprep.subr.bf16.mxu0 0
        %1366 = vmatpush2.bf16.msra.mxu0 0
        %1367 = vmatprep.subr.bf16.mxu0 0
        %1368 = vmatpush2.bf16.msra.mxu0 0
        %1369 = vmatprep.subr.bf16.mxu0 0
        %1370 = vmatpush2.bf16.msra.mxu0 0
        %1371 = vmatprep.subr.bf16.mxu0 0
        %1372 = vmatpush2.bf16.msra.mxu0 0
        %1373 = vmatprep.subr.bf16.mxu0 0
        %1374 = vmatpush2.bf16.msra.mxu0 0
        %1375 = vmatprep.subr.bf16.mxu0 0
        %1376 = vmatpush2.bf16.msra.mxu0 0
        %1377 = vmatprep.mubr.bf16.mxu0 0
        %1378 = vmatmul.mubr.bf16.gmra.mxu0 %v1293
        %v1379 = vpop.f32.mrf.mxu0
        %v1380 = vadd.f32 %v1290, %v1379
        %v1381 = vpop.f32.mrf.mxu0
        %v1382 = vpop.f32.mrf.mxu0
        %v1383 = vpop.f32.mrf.mxu0
        %1384 = vdwg.mxu0
        %v1385 = vadd.f32 %v1339, %v637
        %v1386 = vadd.f32 %v1341, %v638
        %v1387 = vadd.f32 %v1380, %v639
        %v1388 = vmax.f32 %v1385, 0.0
        %v1389 = vmax.f32 %v1386, 0.0
        %v1390 = vmax.f32 %v1387, 0.0
        %v1391 = vsel %vm634, %v1388, 0.0
        %v1392 = vsel %vm635, %v1389, 0.0
        %v1393 = vsel %vm636, %v1390, 0.0
        %1397 = vrot.lane.b32.xlu0 %v1391, 19
        %v1398 = vpop.permute.xlu0 %1397
        %1399 = vrot.lane.b32.xlu0 %v1392, 19
        %v1400 = vpop.permute.xlu0 %1399
        %1401 = vrot.lane.b32.xlu0 %v1393, 19
        %v1402 = vpop.permute.xlu0 %1401
        %v1403 = vsel %vm649, %v1398, %v1400
        %v1404 = vsel %vm649, %v1400, %v1402
        %1408 = vst.msk [vmem:[#allocation2] sm:$0xff] %vm655, %v1398
        %1409 = vst [vmem:[#allocation2 + $0x8] sm:$0xff] %v1403
        %1410 = vst.msk [vmem:[#allocation2 + $0x10] sm:$0xff] %vm658, %v1404
        %v1411 = vld [vmem:[#allocation2] sm:$0xff]
        %v1412 = vld [vmem:[#allocation2 + $0x8] sm:$0xff]
        %v1413 = vld [vmem:[#allocation2 + $0x10] sm:$0xff]
        %1414 = vst [vmem:[#allocation3] sm:$0xff] %v1411
        %1415 = vst [vmem:[#allocation3 + $0x8] sm:$0xff] %v1412
        %1416 = vst [vmem:[#allocation3 + $0x10] sm:$0xff] %v1413
        %v1417 = vld [vmem:[#allocation2] sm:$0xff]
        %v1418 = vld [vmem:[#allocation2 + $0x8] sm:$0xff]
        %v1419 = vld [vmem:[#allocation2 + $0x10] sm:$0xff]
        %v1420 = vld [vmem:[#allocation2 + $0x18] sm:$0xff]
        %1425 = vrot.lane.b32.xlu0 %v1417, 127
        %v1426 = vpop.permute.xlu0 %1425
        %1427 = vrot.lane.b32.xlu0 %v1418, 127
        %v1428 = vpop.permute.xlu0 %1427
        %1429 = vrot.lane.b32.xlu0 %v1419, 127
        %v1430 = vpop.permute.xlu0 %1429
        %1431 = vrot.lane.b32.xlu0 %v1420, 127
        %v1432 = vpop.permute.xlu0 %1431
        %v1433 = vsel %vm281, %v1426, %v1428
        %v1434 = vsel %vm281, %v1428, %v1430
        %v1435 = vsel %vm281, %v1430, %v1432
        %1439 = vst [vmem:[#allocation3 + $0x18] sm:$0xff] %v1433
        %1440 = vst [vmem:[#allocation3 + $0x20] sm:$0xff] %v1434
        %1441 = vst [vmem:[#allocation3 + $0x28] sm:$0xff] %v1435
        %v1442 = vld [vmem:[#allocation2] sm:$0xff]
        %v1443 = vld [vmem:[#allocation2 + $0x8] sm:$0xff]
        %v1444 = vld [vmem:[#allocation2 + $0x10] sm:$0xff]
        %v1445 = vld [vmem:[#allocation2 + $0x18] sm:$0xff]
        %1450 = vrot.lane.b32.xlu0 %v1442, 126
        %v1451 = vpop.permute.xlu0 %1450
        %1452 = vrot.lane.b32.xlu0 %v1443, 126
        %v1453 = vpop.permute.xlu0 %1452
        %1454 = vrot.lane.b32.xlu0 %v1444, 126
        %v1455 = vpop.permute.xlu0 %1454
        %1456 = vrot.lane.b32.xlu0 %v1445, 126
        %v1457 = vpop.permute.xlu0 %1456
        %v1458 = vsel %vm307, %v1451, %v1453
        %v1459 = vsel %vm307, %v1453, %v1455
        %v1460 = vsel %vm307, %v1455, %v1457
        %1464 = vst [vmem:[#allocation3 + $0x30] sm:$0xff] %v1458
        %1465 = vst [vmem:[#allocation3 + $0x38] sm:$0xff] %v1459
        %1466 = vst [vmem:[#allocation3 + $0x40] sm:$0xff] %v1460
        %v1467 = vld [vmem:[#allocation2] sm:$0xff]
        %v1468 = vld [vmem:[#allocation2 + $0x8] sm:$0xff]
        %v1469 = vld [vmem:[#allocation2 + $0x10] sm:$0xff]
        %v1470 = vld [vmem:[#allocation2 + $0x18] sm:$0xff]
        %1475 = vrot.lane.b32.xlu0 %v1467, 110
        %v1476 = vpop.permute.xlu0 %1475
        %1477 = vrot.lane.b32.xlu0 %v1468, 110
        %v1478 = vpop.permute.xlu0 %1477
        %1479 = vrot.lane.b32.xlu0 %v1469, 110
        %v1480 = vpop.permute.xlu0 %1479
        %1481 = vrot.lane.b32.xlu0 %v1470, 110
        %v1482 = vpop.permute.xlu0 %1481
        %v1483 = vsel %vm333, %v1476, %v1478
        %v1484 = vsel %vm333, %v1478, %v1480
        %v1485 = vsel %vm333, %v1480, %v1482
        %1489 = vst [vmem:[#allocation3 + $0x48] sm:$0xff] %v1483
        %1490 = vst [vmem:[#allocation3 + $0x50] sm:$0xff] %v1484
        %1491 = vst [vmem:[#allocation3 + $0x58] sm:$0xff] %v1485
        %v1492 = vld [vmem:[#allocation2] sm:$0xff]
        %v1493 = vld [vmem:[#allocation2 + $0x8] sm:$0xff]
        %v1494 = vld [vmem:[#allocation2 + $0x10] sm:$0xff]
        %v1495 = vld [vmem:[#allocation2 + $0x18] sm:$0xff]
        %1500 = vrot.lane.b32.xlu0 %v1492, 109
        %v1501 = vpop.permute.xlu0 %1500
        %1502 = vrot.lane.b32.xlu0 %v1493, 109
        %v1503 = vpop.permute.xlu0 %1502
        %1504 = vrot.lane.b32.xlu0 %v1494, 109
        %v1505 = vpop.permute.xlu0 %1504
        %1506 = vrot.lane.b32.xlu0 %v1495, 109
        %v1507 = vpop.permute.xlu0 %1506
        %v1508 = vsel %vm359, %v1501, %v1503
        %v1509 = vsel %vm359, %v1503, %v1505
        %v1510 = vsel %vm359, %v1505, %v1507
        %1514 = vst [vmem:[#allocation3 + $0x60] sm:$0xff] %v1508
        %1515 = vst [vmem:[#allocation3 + $0x68] sm:$0xff] %v1509
        %1516 = vst [vmem:[#allocation3 + $0x70] sm:$0xff] %v1510
        %v1517 = vld [vmem:[#allocation2] sm:$0xff]
        %v1518 = vld [vmem:[#allocation2 + $0x8] sm:$0xff]
        %v1519 = vld [vmem:[#allocation2 + $0x10] sm:$0xff]
        %v1520 = vld [vmem:[#allocation2 + $0x18] sm:$0xff]
        %1525 = vrot.lane.b32.xlu0 %v1517, 108
        %v1526 = vpop.permute.xlu0 %1525
        %1527 = vrot.lane.b32.xlu0 %v1518, 108
        %v1528 = vpop.permute.xlu0 %1527
        %1529 = vrot.lane.b32.xlu0 %v1519, 108
        %v1530 = vpop.permute.xlu0 %1529
        %1531 = vrot.lane.b32.xlu0 %v1520, 108
        %v1532 = vpop.permute.xlu0 %1531
        %v1533 = vsel %vm385, %v1526, %v1528
        %v1534 = vsel %vm385, %v1528, %v1530
        %v1535 = vsel %vm385, %v1530, %v1532
        %1539 = vst [vmem:[#allocation3 + $0x78] sm:$0xff] %v1533
        %1540 = vst [vmem:[#allocation3 + $0x80] sm:$0xff] %v1534
        %1541 = vst [vmem:[#allocation3 + $0x88] sm:$0xff] %v1535
        %v1542 = vld [vmem:[#allocation2] sm:$0xff]
        %v1543 = vld [vmem:[#allocation2 + $0x8] sm:$0xff]
        %v1544 = vld [vmem:[#allocation2 + $0x10] sm:$0xff]
        %v1545 = vld [vmem:[#allocation2 + $0x18] sm:$0xff]
        %1550 = vrot.lane.b32.xlu0 %v1542, 92
        %v1551 = vpop.permute.xlu0 %1550
        %1552 = vrot.lane.b32.xlu0 %v1543, 92
        %v1553 = vpop.permute.xlu0 %1552
        %1554 = vrot.lane.b32.xlu0 %v1544, 92
        %v1555 = vpop.permute.xlu0 %1554
        %1556 = vrot.lane.b32.xlu0 %v1545, 92
        %v1557 = vpop.permute.xlu0 %1556
        %v1558 = vsel %vm411, %v1551, %v1553
        %v1559 = vsel %vm411, %v1553, %v1555
        %v1560 = vsel %vm411, %v1555, %v1557
        %1564 = vst [vmem:[#allocation3 + $0x90] sm:$0xff] %v1558
        %1565 = vst [vmem:[#allocation3 + $0x98] sm:$0xff] %v1559
        %1566 = vst [vmem:[#allocation3 + $0xa0] sm:$0xff] %v1560
        %v1567 = vld [vmem:[#allocation2] sm:$0xff]
        %v1568 = vld [vmem:[#allocation2 + $0x8] sm:$0xff]
        %v1569 = vld [vmem:[#allocation2 + $0x10] sm:$0xff]
        %v1570 = vld [vmem:[#allocation2 + $0x18] sm:$0xff]
        %1575 = vrot.lane.b32.xlu0 %v1567, 91
        %v1576 = vpop.permute.xlu0 %1575
        %1577 = vrot.lane.b32.xlu0 %v1568, 91
        %v1578 = vpop.permute.xlu0 %1577
        %1579 = vrot.lane.b32.xlu0 %v1569, 91
        %v1580 = vpop.permute.xlu0 %1579
        %1581 = vrot.lane.b32.xlu0 %v1570, 91
        %v1582 = vpop.permute.xlu0 %1581
        %v1583 = vsel %vm437, %v1576, %v1578
        %v1584 = vsel %vm437, %v1578, %v1580
        %v1585 = vsel %vm437, %v1580, %v1582
        %1589 = vst [vmem:[#allocation3 + $0xa8] sm:$0xff] %v1583
        %1590 = vst [vmem:[#allocation3 + $0xb0] sm:$0xff] %v1584
        %1591 = vst [vmem:[#allocation3 + $0xb8] sm:$0xff] %v1585
        %v1592 = vld [vmem:[#allocation2] sm:$0xff]
        %v1593 = vld [vmem:[#allocation2 + $0x8] sm:$0xff]
        %v1594 = vld [vmem:[#allocation2 + $0x10] sm:$0xff]
        %v1595 = vld [vmem:[#allocation2 + $0x18] sm:$0xff]
        %1600 = vrot.lane.b32.xlu0 %v1592, 90
        %v1601 = vpop.permute.xlu0 %1600
        %1602 = vrot.lane.b32.xlu0 %v1593, 90
        %v1603 = vpop.permute.xlu0 %1602
        %1604 = vrot.lane.b32.xlu0 %v1594, 90
        %v1605 = vpop.permute.xlu0 %1604
        %1606 = vrot.lane.b32.xlu0 %v1595, 90
        %v1607 = vpop.permute.xlu0 %1606
        %v1608 = vsel %vm463, %v1601, %v1603
        %v1609 = vsel %vm463, %v1603, %v1605
        %v1610 = vsel %vm463, %v1605, %v1607
        %1614 = vst [vmem:[#allocation3 + $0xc0] sm:$0xff] %v1608
        %1615 = vst [vmem:[#allocation3 + $0xc8] sm:$0xff] %v1609
        %1616 = vst [vmem:[#allocation3 + $0xd0] sm:$0xff] %v1610
        %s1617 = scalar_lea.vmem %s1, 24
        %v1618 = vld [vmem:[%s1617] sm:$0xff]
        %v1619 = vpack.c.bf16 %v1618, %v1618
        %v1620 = vld [vmem:[#allocation3] sm:$0xff]
        %v1621 = vld [vmem:[#allocation3 + $0x8] sm:$0xff]
        %v1622 = vld [vmem:[#allocation3 + $0x10] sm:$0xff]
        %v1623 = vld [vmem:[#allocation3 + $0x18] sm:$0xff]
        %v1624 = vld [vmem:[#allocation3 + $0x20] sm:$0xff]
        %v1625 = vld [vmem:[#allocation3 + $0x28] sm:$0xff]
        %v1626 = vld [vmem:[#allocation3 + $0x30] sm:$0xff]
        %v1627 = vld [vmem:[#allocation3 + $0x38] sm:$0xff]
        %v1628 = vld [vmem:[#allocation3 + $0x40] sm:$0xff]
        %v1629 = vld [vmem:[#allocation3 + $0x48] sm:$0xff]
        %v1630 = vld [vmem:[#allocation3 + $0x50] sm:$0xff]
        %v1631 = vld [vmem:[#allocation3 + $0x58] sm:$0xff]
        %v1632 = vld [vmem:[#allocation3 + $0x60] sm:$0xff]
        %v1633 = vld [vmem:[#allocation3 + $0x68] sm:$0xff]
        %v1634 = vld [vmem:[#allocation3 + $0x70] sm:$0xff]
        %v1635 = vld [vmem:[#allocation3 + $0x78] sm:$0xff]
        %v1636 = vld [vmem:[#allocation3 + $0x80] sm:$0xff]
        %v1637 = vld [vmem:[#allocation3 + $0x88] sm:$0xff]
        %v1638 = vld [vmem:[#allocation3 + $0x90] sm:$0xff]
        %v1639 = vld [vmem:[#allocation3 + $0x98] sm:$0xff]
        %v1640 = vld [vmem:[#allocation3 + $0xa0] sm:$0xff]
        %v1641 = vld [vmem:[#allocation3 + $0xa8] sm:$0xff]
        %v1642 = vld [vmem:[#allocation3 + $0xb0] sm:$0xff]
        %v1643 = vld [vmem:[#allocation3 + $0xb8] sm:$0xff]
        %v1644 = vld [vmem:[#allocation3 + $0xc0] sm:$0xff]
        %v1645 = vld [vmem:[#allocation3 + $0xc8] sm:$0xff]
        %v1646 = vld [vmem:[#allocation3 + $0xd0] sm:$0xff]
        %v1647 = vpack.c.bf16 %v1623, %v1620
        %v1648 = vpack.c.bf16 %v1624, %v1621
        %v1649 = vpack.c.bf16 %v1625, %v1622
        %v1650 = vpack.c.bf16 %v1629, %v1626
        %v1651 = vpack.c.bf16 %v1630, %v1627
        %v1652 = vpack.c.bf16 %v1631, %v1628
        %v1653 = vpack.c.bf16 %v1635, %v1632
        %v1654 = vpack.c.bf16 %v1636, %v1633
        %v1655 = vpack.c.bf16 %v1637, %v1634
        %v1656 = vpack.c.bf16 %v1641, %v1638
        %v1657 = vpack.c.bf16 %v1642, %v1639
        %v1658 = vpack.c.bf16 %v1643, %v1640
        %v1659 = vpack.c.bf16 %v1644, %v1644
        %v1660 = vpack.c.bf16 %v1645, %v1645
        %v1661 = vpack.c.bf16 %v1646, %v1646
        %s1662 = scalar_lea.vmem %s2, 24
        %v1663 = vld [vmem:[%s1662] sm:$0xff]
        %1665 = vset.pattern.permute.xlu0 0
        %1666 = vperm.xlu0 %1665, %v1663
        %v1667 = vpop.permute.xlu0 %1666
        %v1670 = vsel %vm523, %v1619, 0
        %v1673 = vsel %vm527, %v1659, 0
        %v1676 = vsel %vm527, %v1660, 0
        %v1679 = vsel %vm527, %v1661, 0
        %1681 = vmatprep.subr.bf16.mxu0 0
        %1682 = vmatpush1.bf16.msra.mxu0 0
        %1683 = vmatprep.subr.bf16.mxu0 0
        %1684 = vmatpush1.bf16.msra.mxu0 0
        %1685 = vmatprep.subr.bf16.mxu0 0
        %1686 = vmatpush1.bf16.msra.mxu0 0
        %1687 = vmatprep.subr.bf16.mxu0 %v1676
        %1688 = vmatpush1.bf16.msra.mxu0 %v1673
        %1689 = vmatprep.subr.bf16.mxu0 %v1657
        %1690 = vmatpush1.bf16.msra.mxu0 %v1656
        %1691 = vmatprep.subr.bf16.mxu0 %v1654
        %1692 = vmatpush1.bf16.msra.mxu0 %v1653
        %1693 = vmatprep.subr.bf16.mxu0 %v1651
        %1694 = vmatpush1.bf16.msra.mxu0 %v1650
        %1695 = vmatprep.subr.bf16.mxu0 %v1648
        %1696 = vmatpush1.bf16.msra.mxu0 %v1647
        %1697 = vmatprep.subr.bf16.mxu0 0
        %1698 = vmatpush2.bf16.msra.mxu0 0
        %1699 = vmatprep.subr.bf16.mxu0 0
        %1700 = vmatpush2.bf16.msra.mxu0 0
        %1701 = vmatprep.subr.bf16.mxu0 0
        %1702 = vmatpush2.bf16.msra.mxu0 0
        %1703 = vmatprep.subr.bf16.mxu0 0
        %1704 = vmatpush2.bf16.msra.mxu0 0
        %1705 = vmatprep.subr.bf16.mxu0 0
        %1706 = vmatpush2.bf16.msra.mxu0 0
        %1707 = vmatprep.subr.bf16.mxu0 0
        %1708 = vmatpush2.bf16.msra.mxu0 0
        %1709 = vmatprep.subr.bf16.mxu0 0
        %1710 = vmatpush2.bf16.msra.mxu0 0
        %1711 = vmatprep.subr.bf16.mxu0 0
        %1712 = vmatpush2.bf16.msra.mxu0 0
        %1713 = vmatprep.mubr.bf16.mxu0 0
        %1714 = vmatmul.mubr.bf16.gmra.mxu0 %v1670
        %v1715 = vpop.f32.mrf.mxu0
        %v1716 = vadd.f32 %v1667, %v1715
        %v1717 = vpop.f32.mrf.mxu0
        %v1718 = vadd.f32 %v1667, %v1717
        %v1719 = vpop.f32.mrf.mxu0
        %v1720 = vpop.f32.mrf.mxu0
        %1721 = vdwg.mxu0
        %1722 = vmatprep.subr.bf16.mxu0 0
        %1723 = vmatpush1.bf16.msra.mxu0 0
        %1724 = vmatprep.subr.bf16.mxu0 0
        %1725 = vmatpush1.bf16.msra.mxu0 0
        %1726 = vmatprep.subr.bf16.mxu0 0
        %1727 = vmatpush1.bf16.msra.mxu0 0
        %1728 = vmatprep.subr.bf16.mxu0 0
        %1729 = vmatpush1.bf16.msra.mxu0 %v1679
        %1730 = vmatprep.subr.bf16.mxu0 0
        %1731 = vmatpush1.bf16.msra.mxu0 %v1658
        %1732 = vmatprep.subr.bf16.mxu0 0
        %1733 = vmatpush1.bf16.msra.mxu0 %v1655
        %1734 = vmatprep.subr.bf16.mxu0 0
        %1735 = vmatpush1.bf16.msra.mxu0 %v1652
        %1736 = vmatprep.subr.bf16.mxu0 0
        %1737 = vmatpush1.bf16.msra.mxu0 %v1649
        %1738 = vmatprep.subr.bf16.mxu0 0
        %1739 = vmatpush2.bf16.msra.mxu0 0
        %1740 = vmatprep.subr.bf16.mxu0 0
        %1741 = vmatpush2.bf16.msra.mxu0 0
        %1742 = vmatprep.subr.bf16.mxu0 0
        %1743 = vmatpush2.bf16.msra.mxu0 0
        %1744 = vmatprep.subr.bf16.mxu0 0
        %1745 = vmatpush2.bf16.msra.mxu0 0
        %1746 = vmatprep.subr.bf16.mxu0 0
        %1747 = vmatpush2.bf16.msra.mxu0 0
        %1748 = vmatprep.subr.bf16.mxu0 0
        %1749 = vmatpush2.bf16.msra.mxu0 0
        %1750 = vmatprep.subr.bf16.mxu0 0
        %1751 = vmatpush2.bf16.msra.mxu0 0
        %1752 = vmatprep.subr.bf16.mxu0 0
        %1753 = vmatpush2.bf16.msra.mxu0 0
        %1754 = vmatprep.mubr.bf16.mxu0 0
        %1755 = vmatmul.mubr.bf16.gmra.mxu0 %v1670
        %v1756 = vpop.f32.mrf.mxu0
        %v1757 = vadd.f32 %v1667, %v1756
        %v1758 = vpop.f32.mrf.mxu0
        %v1759 = vpop.f32.mrf.mxu0
        %v1760 = vpop.f32.mrf.mxu0
        %1761 = vdwg.mxu0
        %v1762 = vmax.f32 %v1716, 0.0
        %v1763 = vmax.f32 %v1718, 0.0
        %v1764 = vmax.f32 %v1757, 0.0
        %v1765 = vsel %vm634, %v1762, 0.0
        %v1766 = vsel %vm635, %v1763, 0.0
        %v1767 = vsel %vm636, %v1764, 0.0
        %1771 = vrot.lane.b32.xlu0 %v1765, 19
        %v1772 = vpop.permute.xlu0 %1771
        %1773 = vrot.lane.b32.xlu0 %v1766, 19
        %v1774 = vpop.permute.xlu0 %1773
        %1775 = vrot.lane.b32.xlu0 %v1767, 19
        %v1776 = vpop.permute.xlu0 %1775
        %v1777 = vsel %vm649, %v1772, %v1774
        %v1778 = vsel %vm649, %v1774, %v1776
        %1782 = vst.msk [vmem:[#allocation2] sm:$0xff] %vm655, %v1772
        %1783 = vst [vmem:[#allocation2 + $0x8] sm:$0xff] %v1777
        %1784 = vst.msk [vmem:[#allocation2 + $0x10] sm:$0xff] %vm658, %v1778
        %v1785 = vld [vmem:[#allocation2] sm:$0xff]
        %v1786 = vld [vmem:[#allocation2 + $0x8] sm:$0xff]
        %v1787 = vld [vmem:[#allocation2 + $0x10] sm:$0xff]
        %1788 = vst [vmem:[#allocation3] sm:$0xff] %v1785
        %1789 = vst [vmem:[#allocation3 + $0x8] sm:$0xff] %v1786
        %1790 = vst [vmem:[#allocation3 + $0x10] sm:$0xff] %v1787
        %v1791 = vld [vmem:[#allocation2] sm:$0xff]
        %v1792 = vld [vmem:[#allocation2 + $0x8] sm:$0xff]
        %v1793 = vld [vmem:[#allocation2 + $0x10] sm:$0xff]
        %v1794 = vld [vmem:[#allocation2 + $0x18] sm:$0xff]
        %1799 = vrot.lane.b32.xlu0 %v1791, 127
        %v1800 = vpop.permute.xlu0 %1799
        %1801 = vrot.lane.b32.xlu0 %v1792, 127
        %v1802 = vpop.permute.xlu0 %1801
        %1803 = vrot.lane.b32.xlu0 %v1793, 127
        %v1804 = vpop.permute.xlu0 %1803
        %1805 = vrot.lane.b32.xlu0 %v1794, 127
        %v1806 = vpop.permute.xlu0 %1805
        %v1807 = vsel %vm281, %v1800, %v1802
        %v1808 = vsel %vm281, %v1802, %v1804
        %v1809 = vsel %vm281, %v1804, %v1806
        %1813 = vst [vmem:[#allocation3 + $0x18] sm:$0xff] %v1807
        %1814 = vst [vmem:[#allocation3 + $0x20] sm:$0xff] %v1808
        %1815 = vst [vmem:[#allocation3 + $0x28] sm:$0xff] %v1809
        %v1816 = vld [vmem:[#allocation2] sm:$0xff]
        %v1817 = vld [vmem:[#allocation2 + $0x8] sm:$0xff]
        %v1818 = vld [vmem:[#allocation2 + $0x10] sm:$0xff]
        %v1819 = vld [vmem:[#allocation2 + $0x18] sm:$0xff]
        %1824 = vrot.lane.b32.xlu0 %v1816, 126
        %v1825 = vpop.permute.xlu0 %1824
        %1826 = vrot.lane.b32.xlu0 %v1817, 126
        %v1827 = vpop.permute.xlu0 %1826
        %1828 = vrot.lane.b32.xlu0 %v1818, 126
        %v1829 = vpop.permute.xlu0 %1828
        %1830 = vrot.lane.b32.xlu0 %v1819, 126
        %v1831 = vpop.permute.xlu0 %1830
        %v1832 = vsel %vm307, %v1825, %v1827
        %v1833 = vsel %vm307, %v1827, %v1829
        %v1834 = vsel %vm307, %v1829, %v1831
        %1838 = vst [vmem:[#allocation3 + $0x30] sm:$0xff] %v1832
        %1839 = vst [vmem:[#allocation3 + $0x38] sm:$0xff] %v1833
        %1840 = vst [vmem:[#allocation3 + $0x40] sm:$0xff] %v1834
        %v1841 = vld [vmem:[#allocation2] sm:$0xff]
        %v1842 = vld [vmem:[#allocation2 + $0x8] sm:$0xff]
        %v1843 = vld [vmem:[#allocation2 + $0x10] sm:$0xff]
        %v1844 = vld [vmem:[#allocation2 + $0x18] sm:$0xff]
        %1849 = vrot.lane.b32.xlu0 %v1841, 110
        %v1850 = vpop.permute.xlu0 %1849
        %1851 = vrot.lane.b32.xlu0 %v1842, 110
        %v1852 = vpop.permute.xlu0 %1851
        %1853 = vrot.lane.b32.xlu0 %v1843, 110
        %v1854 = vpop.permute.xlu0 %1853
        %1855 = vrot.lane.b32.xlu0 %v1844, 110
        %v1856 = vpop.permute.xlu0 %1855
        %v1857 = vsel %vm333, %v1850, %v1852
        %v1858 = vsel %vm333, %v1852, %v1854
        %v1859 = vsel %vm333, %v1854, %v1856
        %1863 = vst [vmem:[#allocation3 + $0x48] sm:$0xff] %v1857
        %1864 = vst [vmem:[#allocation3 + $0x50] sm:$0xff] %v1858
        %1865 = vst [vmem:[#allocation3 + $0x58] sm:$0xff] %v1859
        %v1866 = vld [vmem:[#allocation2] sm:$0xff]
        %v1867 = vld [vmem:[#allocation2 + $0x8] sm:$0xff]
        %v1868 = vld [vmem:[#allocation2 + $0x10] sm:$0xff]
        %v1869 = vld [vmem:[#allocation2 + $0x18] sm:$0xff]
        %1874 = vrot.lane.b32.xlu0 %v1866, 109
        %v1875 = vpop.permute.xlu0 %1874
        %1876 = vrot.lane.b32.xlu0 %v1867, 109
        %v1877 = vpop.permute.xlu0 %1876
        %1878 = vrot.lane.b32.xlu0 %v1868, 109
        %v1879 = vpop.permute.xlu0 %1878
        %1880 = vrot.lane.b32.xlu0 %v1869, 109
        %v1881 = vpop.permute.xlu0 %1880
        %v1882 = vsel %vm359, %v1875, %v1877
        %v1883 = vsel %vm359, %v1877, %v1879
        %v1884 = vsel %vm359, %v1879, %v1881
        %1888 = vst [vmem:[#allocation3 + $0x60] sm:$0xff] %v1882
        %1889 = vst [vmem:[#allocation3 + $0x68] sm:$0xff] %v1883
        %1890 = vst [vmem:[#allocation3 + $0x70] sm:$0xff] %v1884
        %v1891 = vld [vmem:[#allocation2] sm:$0xff]
        %v1892 = vld [vmem:[#allocation2 + $0x8] sm:$0xff]
        %v1893 = vld [vmem:[#allocation2 + $0x10] sm:$0xff]
        %v1894 = vld [vmem:[#allocation2 + $0x18] sm:$0xff]
        %1899 = vrot.lane.b32.xlu0 %v1891, 108
        %v1900 = vpop.permute.xlu0 %1899
        %1901 = vrot.lane.b32.xlu0 %v1892, 108
        %v1902 = vpop.permute.xlu0 %1901
        %1903 = vrot.lane.b32.xlu0 %v1893, 108
        %v1904 = vpop.permute.xlu0 %1903
        %1905 = vrot.lane.b32.xlu0 %v1894, 108
        %v1906 = vpop.permute.xlu0 %1905
        %v1907 = vsel %vm385, %v1900, %v1902
        %v1908 = vsel %vm385, %v1902, %v1904
        %v1909 = vsel %vm385, %v1904, %v1906
        %1913 = vst [vmem:[#allocation3 + $0x78] sm:$0xff] %v1907
        %1914 = vst [vmem:[#allocation3 + $0x80] sm:$0xff] %v1908
        %1915 = vst [vmem:[#allocation3 + $0x88] sm:$0xff] %v1909
        %v1916 = vld [vmem:[#allocation2] sm:$0xff]
        %v1917 = vld [vmem:[#allocation2 + $0x8] sm:$0xff]
        %v1918 = vld [vmem:[#allocation2 + $0x10] sm:$0xff]
        %v1919 = vld [vmem:[#allocation2 + $0x18] sm:$0xff]
        %1924 = vrot.lane.b32.xlu0 %v1916, 92
        %v1925 = vpop.permute.xlu0 %1924
        %1926 = vrot.lane.b32.xlu0 %v1917, 92
        %v1927 = vpop.permute.xlu0 %1926
        %1928 = vrot.lane.b32.xlu0 %v1918, 92
        %v1929 = vpop.permute.xlu0 %1928
        %1930 = vrot.lane.b32.xlu0 %v1919, 92
        %v1931 = vpop.permute.xlu0 %1930
        %v1932 = vsel %vm411, %v1925, %v1927
        %v1933 = vsel %vm411, %v1927, %v1929
        %v1934 = vsel %vm411, %v1929, %v1931
        %1938 = vst [vmem:[#allocation3 + $0x90] sm:$0xff] %v1932
        %1939 = vst [vmem:[#allocation3 + $0x98] sm:$0xff] %v1933
        %1940 = vst [vmem:[#allocation3 + $0xa0] sm:$0xff] %v1934
        %v1941 = vld [vmem:[#allocation2] sm:$0xff]
        %v1942 = vld [vmem:[#allocation2 + $0x8] sm:$0xff]
        %v1943 = vld [vmem:[#allocation2 + $0x10] sm:$0xff]
        %v1944 = vld [vmem:[#allocation2 + $0x18] sm:$0xff]
        %1949 = vrot.lane.b32.xlu0 %v1941, 91
        %v1950 = vpop.permute.xlu0 %1949
        %1951 = vrot.lane.b32.xlu0 %v1942, 91
        %v1952 = vpop.permute.xlu0 %1951
        %1953 = vrot.lane.b32.xlu0 %v1943, 91
        %v1954 = vpop.permute.xlu0 %1953
        %1955 = vrot.lane.b32.xlu0 %v1944, 91
        %v1956 = vpop.permute.xlu0 %1955
        %v1957 = vsel %vm437, %v1950, %v1952
        %v1958 = vsel %vm437, %v1952, %v1954
        %v1959 = vsel %vm437, %v1954, %v1956
        %1963 = vst [vmem:[#allocation3 + $0xa8] sm:$0xff] %v1957
        %1964 = vst [vmem:[#allocation3 + $0xb0] sm:$0xff] %v1958
        %1965 = vst [vmem:[#allocation3 + $0xb8] sm:$0xff] %v1959
        %v1966 = vld [vmem:[#allocation2] sm:$0xff]
        %v1967 = vld [vmem:[#allocation2 + $0x8] sm:$0xff]
        %v1968 = vld [vmem:[#allocation2 + $0x10] sm:$0xff]
        %v1969 = vld [vmem:[#allocation2 + $0x18] sm:$0xff]
        %1974 = vrot.lane.b32.xlu0 %v1966, 90
        %v1975 = vpop.permute.xlu0 %1974
        %1976 = vrot.lane.b32.xlu0 %v1967, 90
        %v1977 = vpop.permute.xlu0 %1976
        %1978 = vrot.lane.b32.xlu0 %v1968, 90
        %v1979 = vpop.permute.xlu0 %1978
        %1980 = vrot.lane.b32.xlu0 %v1969, 90
        %v1981 = vpop.permute.xlu0 %1980
        %v1982 = vsel %vm463, %v1975, %v1977
        %v1983 = vsel %vm463, %v1977, %v1979
        %v1984 = vsel %vm463, %v1979, %v1981
        %1988 = vst [vmem:[#allocation3 + $0xc0] sm:$0xff] %v1982
        %1989 = vst [vmem:[#allocation3 + $0xc8] sm:$0xff] %v1983
        %1990 = vst [vmem:[#allocation3 + $0xd0] sm:$0xff] %v1984
        %s1991 = scalar_lea.vmem %s1, 32
        %v1992 = vld [vmem:[%s1991] sm:$0xff]
        %v1993 = vpack.c.bf16 %v1992, %v1992
        %v1994 = vld [vmem:[#allocation3] sm:$0xff]
        %v1995 = vld [vmem:[#allocation3 + $0x8] sm:$0xff]
        %v1996 = vld [vmem:[#allocation3 + $0x10] sm:$0xff]
        %v1997 = vld [vmem:[#allocation3 + $0x18] sm:$0xff]
        %v1998 = vld [vmem:[#allocation3 + $0x20] sm:$0xff]
        %v1999 = vld [vmem:[#allocation3 + $0x28] sm:$0xff]
        %v2000 = vld [vmem:[#allocation3 + $0x30] sm:$0xff]
        %v2001 = vld [vmem:[#allocation3 + $0x38] sm:$0xff]
        %v2002 = vld [vmem:[#allocation3 + $0x40] sm:$0xff]
        %v2003 = vld [vmem:[#allocation3 + $0x48] sm:$0xff]
        %v2004 = vld [vmem:[#allocation3 + $0x50] sm:$0xff]
        %v2005 = vld [vmem:[#allocation3 + $0x58] sm:$0xff]
        %v2006 = vld [vmem:[#allocation3 + $0x60] sm:$0xff]
        %v2007 = vld [vmem:[#allocation3 + $0x68] sm:$0xff]
        %v2008 = vld [vmem:[#allocation3 + $0x70] sm:$0xff]
        %v2009 = vld [vmem:[#allocation3 + $0x78] sm:$0xff]
        %v2010 = vld [vmem:[#allocation3 + $0x80] sm:$0xff]
        %v2011 = vld [vmem:[#allocation3 + $0x88] sm:$0xff]
        %v2012 = vld [vmem:[#allocation3 + $0x90] sm:$0xff]
        %v2013 = vld [vmem:[#allocation3 + $0x98] sm:$0xff]
        %v2014 = vld [vmem:[#allocation3 + $0xa0] sm:$0xff]
        %v2015 = vld [vmem:[#allocation3 + $0xa8] sm:$0xff]
        %v2016 = vld [vmem:[#allocation3 + $0xb0] sm:$0xff]
        %v2017 = vld [vmem:[#allocation3 + $0xb8] sm:$0xff]
        %v2018 = vld [vmem:[#allocation3 + $0xc0] sm:$0xff]
        %v2019 = vld [vmem:[#allocation3 + $0xc8] sm:$0xff]
        %v2020 = vld [vmem:[#allocation3 + $0xd0] sm:$0xff]
        %v2021 = vpack.c.bf16 %v1997, %v1994
        %v2022 = vpack.c.bf16 %v1998, %v1995
        %v2023 = vpack.c.bf16 %v1999, %v1996
        %v2024 = vpack.c.bf16 %v2003, %v2000
        %v2025 = vpack.c.bf16 %v2004, %v2001
        %v2026 = vpack.c.bf16 %v2005, %v2002
        %v2027 = vpack.c.bf16 %v2009, %v2006
        %v2028 = vpack.c.bf16 %v2010, %v2007
        %v2029 = vpack.c.bf16 %v2011, %v2008
        %v2030 = vpack.c.bf16 %v2015, %v2012
        %v2031 = vpack.c.bf16 %v2016, %v2013
        %v2032 = vpack.c.bf16 %v2017, %v2014
        %v2033 = vpack.c.bf16 %v2018, %v2018
        %v2034 = vpack.c.bf16 %v2019, %v2019
        %v2035 = vpack.c.bf16 %v2020, %v2020
        %s2036 = scalar_lea.vmem %s2, 32
        %v2037 = vld [vmem:[%s2036] sm:$0xff]
        %2039 = vset.pattern.permute.xlu0 0
        %2040 = vperm.xlu0 %2039, %v2037
        %v2041 = vpop.permute.xlu0 %2040
        %v2044 = vsel %vm523, %v1993, 0
        %v2047 = vsel %vm527, %v2033, 0
        %v2050 = vsel %vm527, %v2034, 0
        %v2053 = vsel %vm527, %v2035, 0
        %2055 = vmatprep.subr.bf16.mxu0 0
        %2056 = vmatpush1.bf16.msra.mxu0 0
        %2057 = vmatprep.subr.bf16.mxu0 0
        %2058 = vmatpush1.bf16.msra.mxu0 0
        %2059 = vmatprep.subr.bf16.mxu0 0
        %2060 = vmatpush1.bf16.msra.mxu0 0
        %2061 = vmatprep.subr.bf16.mxu0 %v2050
        %2062 = vmatpush1.bf16.msra.mxu0 %v2047
        %2063 = vmatprep.subr.bf16.mxu0 %v2031
        %2064 = vmatpush1.bf16.msra.mxu0 %v2030
        %2065 = vmatprep.subr.bf16.mxu0 %v2028
        %2066 = vmatpush1.bf16.msra.mxu0 %v2027
        %2067 = vmatprep.subr.bf16.mxu0 %v2025
        %2068 = vmatpush1.bf16.msra.mxu0 %v2024
        %2069 = vmatprep.subr.bf16.mxu0 %v2022
        %2070 = vmatpush1.bf16.msra.mxu0 %v2021
        %2071 = vmatprep.subr.bf16.mxu0 0
        %2072 = vmatpush2.bf16.msra.mxu0 0
        %2073 = vmatprep.subr.bf16.mxu0 0
        %2074 = vmatpush2.bf16.msra.mxu0 0
        %2075 = vmatprep.subr.bf16.mxu0 0
        %2076 = vmatpush2.bf16.msra.mxu0 0
        %2077 = vmatprep.subr.bf16.mxu0 0
        %2078 = vmatpush2.bf16.msra.mxu0 0
        %2079 = vmatprep.subr.bf16.mxu0 0
        %2080 = vmatpush2.bf16.msra.mxu0 0
        %2081 = vmatprep.subr.bf16.mxu0 0
        %2082 = vmatpush2.bf16.msra.mxu0 0
        %2083 = vmatprep.subr.bf16.mxu0 0
        %2084 = vmatpush2.bf16.msra.mxu0 0
        %2085 = vmatprep.subr.bf16.mxu0 0
        %2086 = vmatpush2.bf16.msra.mxu0 0
        %2087 = vmatprep.mubr.bf16.mxu0 0
        %2088 = vmatmul.mubr.bf16.gmra.mxu0 %v2044
        %v2089 = vpop.f32.mrf.mxu0
        %v2090 = vadd.f32 %v2041, %v2089
        %v2091 = vpop.f32.mrf.mxu0
        %v2092 = vadd.f32 %v2041, %v2091
        %v2093 = vpop.f32.mrf.mxu0
        %v2094 = vpop.f32.mrf.mxu0
        %2095 = vdwg.mxu0
        %2096 = vmatprep.subr.bf16.mxu0 0
        %2097 = vmatpush1.bf16.msra.mxu0 0
        %2098 = vmatprep.subr.bf16.mxu0 0
        %2099 = vmatpush1.bf16.msra.mxu0 0
        %2100 = vmatprep.subr.bf16.mxu0 0
        %2101 = vmatpush1.bf16.msra.mxu0 0
        %2102 = vmatprep.subr.bf16.mxu0 0
        %2103 = vmatpush1.bf16.msra.mxu0 %v2053
        %2104 = vmatprep.subr.bf16.mxu0 0
        %2105 = vmatpush1.bf16.msra.mxu0 %v2032
        %2106 = vmatprep.subr.bf16.mxu0 0
        %2107 = vmatpush1.bf16.msra.mxu0 %v2029
        %2108 = vmatprep.subr.bf16.mxu0 0
        %2109 = vmatpush1.bf16.msra.mxu0 %v2026
        %2110 = vmatprep.subr.bf16.mxu0 0
        %2111 = vmatpush1.bf16.msra.mxu0 %v2023
        %2112 = vmatprep.subr.bf16.mxu0 0
        %2113 = vmatpush2.bf16.msra.mxu0 0
        %2114 = vmatprep.subr.bf16.mxu0 0
        %2115 = vmatpush2.bf16.msra.mxu0 0
        %2116 = vmatprep.subr.bf16.mxu0 0
        %2117 = vmatpush2.bf16.msra.mxu0 0
        %2118 = vmatprep.subr.bf16.mxu0 0
        %2119 = vmatpush2.bf16.msra.mxu0 0
        %2120 = vmatprep.subr.bf16.mxu0 0
        %2121 = vmatpush2.bf16.msra.mxu0 0
        %2122 = vmatprep.subr.bf16.mxu0 0
        %2123 = vmatpush2.bf16.msra.mxu0 0
        %2124 = vmatprep.subr.bf16.mxu0 0
        %2125 = vmatpush2.bf16.msra.mxu0 0
        %2126 = vmatprep.subr.bf16.mxu0 0
        %2127 = vmatpush2.bf16.msra.mxu0 0
        %2128 = vmatprep.mubr.bf16.mxu0 0
        %2129 = vmatmul.mubr.bf16.gmra.mxu0 %v2044
        %v2130 = vpop.f32.mrf.mxu0
        %v2131 = vadd.f32 %v2041, %v2130
        %v2132 = vpop.f32.mrf.mxu0
        %v2133 = vpop.f32.mrf.mxu0
        %v2134 = vpop.f32.mrf.mxu0
        %2135 = vdwg.mxu0
        %v2136 = vadd.f32 %v2090, %v1391
        %v2137 = vadd.f32 %v2092, %v1392
        %v2138 = vadd.f32 %v2131, %v1393
        %v2139 = vmax.f32 %v2136, 0.0
        %v2140 = vmax.f32 %v2137, 0.0
        %v2141 = vmax.f32 %v2138, 0.0
        %v2142 = vsel %vm634, %v2139, 0.0
        %v2143 = vsel %vm635, %v2140, 0.0
        %v2144 = vsel %vm636, %v2141, 0.0
        %v2145 = vadd.f32 %v2142, %v2143
        %v2146 = vadd.f32 %v2145, %v2144
        %2147 = vadd.xlane.f32.xlu0 %v2146
        %v2148 = vpop.xlane.xlu0 %2147
        %v2149 = vld [vmem:[%s3] sm:$0xff]
        %v2150 = vmul.f32 %v2148, %v2149
        %v2151 = vrot.slane %v2150, 4
        %v2152 = vadd.f32 %v2150, %v2151
        %v2153 = vrot.slane %v2152, 2
        %v2154 = vadd.f32 %v2152, %v2153
        %v2155 = vrot.slane %v2154, 1
        %v2156 = vadd.f32 %v2154, %v2155
        %v2157 = vld [vmem:[%s4] sm:$0x1]
        %v2158 = vadd.f32 %v2156, %v2157
        %2159 = vst [vmem:[%s243] sm:$0x1] %v2158
        %s2160 = sand.u32 %s159, 1
        %s2161 = scalar_lea.sflag [#allocation5], %s2160
        %s2162 = sand.u32 %s159, 1
        %s2163 = scalar_lea.vmem [#allocation4], %s2162
        // Predicated region
        $region45: #{resnet_cam_forward.1} parent=43 // pred_check
          %p2164 = pneg %p169
        $region46: #{resnet_cam_forward.1} parent=43 // pred_check_branch
          %2166 = sbr.rel (%p2164) target = $region48
        $region47: #{resnet_cam_forward.1} parent=43 // pred_region
          %s2168 = ssub.s32 16, 16
          %2169 = vsyncadd %s2161, %s2168
          %s2170 = smul.addr %s20, 16
          %s2171 = scalar_lea.hbm %s6, %s2170
          %s2173 = sshll.u32 %s2163, 4
          %s2174 = int_to_ptr.vmem [resolvable:$true] %s2173
          %2176 = dma.vmem_to_hbm [thread:$0]  %s2174, 16, %s2171, %s2161
        $region48: #{resnet_cam_forward.1} parent=43 // pred_fallthru
          _
      $region44: #{resnet_cam_forward.1} parent=5 // pred_fallthru
        _
      %p2177 = scmp.le.s32.totalorder 2, %s15
      // Predicated region
      $region49: #{resnet_cam_forward.1} parent=5 // pred_check
        %p2178 = pneg %p2177
      $region50: #{resnet_cam_forward.1} parent=5 // pred_check_branch
        %2180 = sbr.rel (%p2178) target = $region52
      $region51: #{resnet_cam_forward.1} parent=5 // pred_region
        %s2181 = ssub.s32 %s15, 2
        // Predicated region
        $region53: #{resnet_cam_forward.1} parent=51 // pred_check
          %p2182 = pneg %p175
        $region54: #{resnet_cam_forward.1} parent=51 // pred_check_branch
          %2184 = sbr.rel (%p2182) target = $region56
        $region55: #{resnet_cam_forward.1} parent=51 // pred_region
          %s2185 = sand.u32 %s160, 1
          %s2186 = scalar_lea.sflag [#allocation5], %s2185
          %s2187 = sand.u32 %s160, 1
          %s2188 = scalar_lea.vmem [#allocation4], %s2187
          %2189 = dma.done %s2186, 16
        $region56: #{resnet_cam_forward.1} parent=51 // pred_fallthru
          _
      $region52: #{resnet_cam_forward.1} parent=5 // pred_fallthru
        _
    $region6: #{resnet_cam_forward.1} parent=1 // loop_footer
      %s19 = sadd.s32 1, %s15
    $region7: #{resnet_cam_forward.1} parent=1 // loop_footer_branch
      %14 = sbr.rel target = $region3
    $region8: #{resnet_cam_forward.1} parent=1 // loop_exit
      _
    %2190 = vsyncpa [#allocation5], 1
    %s2191 = scalar_lea.sflag [#allocation5], 1
    %2192 = vsyncpa %s2191, 1

</llo_original>
